<compile_context>
chip_gen: v6e
topology: v6e:2x2x1
jax: 0.10.0
libtpu: 0.0.40
codegen_flags: <defaults>
</compile_context>

<pallas_src>
import functools

import jax
import jax.numpy as jnp
from jax import lax
from jax.experimental import pallas as pl
from jax.experimental.pallas import tpu as pltpu


# ----------------------------------------------------------------------------
# Pallas kernels
# ----------------------------------------------------------------------------
def _linear_kernel(x_ref, w_ref, b_ref, o_ref, *, relu):
    acc = jnp.dot(x_ref[...], w_ref[...], preferred_element_type=jnp.float32)
    acc = acc + b_ref[...]                      # (1, N) broadcasts over (M, N)
    if relu:
        acc = jnp.maximum(acc, 0.0)
    o_ref[...] = acc.astype(o_ref.dtype)


def pallas_linear(x, w, b, *, relu=False):
    """y = x @ w + b.  x:(M,K), w:(K,N) (e.g. bf16 operands), b:(N,) f32 -> f32.

    Single-block kernel: at this model's sizes (M<=128, K<=64, N<=256) one
    VMEM-resident block is optimal.
    NOTE: if scaled to real ResNet50 features (K~2048, large M), tile over M/N
    with a "parallel" grid so it fits v7x's 64 MiB VMEM and pipelines DMA.
    """
    M, K = x.shape
    N = w.shape[1]
    b2 = b.reshape(1, N).astype(jnp.float32)
    return pl.pallas_call(
        functools.partial(_linear_kernel, relu=relu),
        out_shape=jax.ShapeDtypeStruct((M, N), jnp.float32),
        grid=(1,),
        in_specs=[
            pl.BlockSpec((M, K), lambda i: (0, 0)),
            pl.BlockSpec((K, N), lambda i: (0, 0)),
            pl.BlockSpec((1, N), lambda i: (0, 0)),
        ],
        out_specs=pl.BlockSpec((M, N), lambda i: (0, 0)),
        compiler_params=pltpu.CompilerParams(dimension_semantics=("arbitrary",)),
    )(x, w, b2)


def _bilstm_layer_kernel(xg_ref, whh_f_ref, whh_b_ref, out_f_ref, out_b_ref):
    """Full bidirectional LSTM layer in one kernel invocation.

    xg_ref   : (T, B, 8H) f32.  Lanes [0:4H] = forward-direction gate
               pre-activations (x @ W_ih^T + b_ih + b_hh), lanes [4H:8H] =
               backward direction; each in reordered gate layout (i, f, o, g).
    whh_*_ref: (H, 4H) f32 recurrent weights (transposed, gates reordered).
    out_f_ref: (T, B, H) forward hidden states, time-major.
    out_b_ref: (T, B, H) backward hidden states, already written to their
               original time index (no flip needed outside the kernel).
    """
    T, B, _ = xg_ref.shape
    H = whh_f_ref.shape[0]
    G = 4 * H

    # Recurrent weights are tiny (H x 4H); load once, keep resident in vregs.
    whh_f = whh_f_ref[...]
    whh_b = whh_b_ref[...]

    def step(s, carry):
        h_f, c_f, h_b, c_b = carry
        rev = T - 1 - s
        x_fwd = xg_ref[s]                 # (B, 8H): forward consumes x[s]
        x_bwd = xg_ref[rev]               # (B, 8H): backward consumes x[T-1-s]

        gf = x_fwd[:, :G] + jnp.dot(h_f, whh_f, preferred_element_type=jnp.float32)
        gb = x_bwd[:, G:] + jnp.dot(h_b, whh_b, preferred_element_type=jnp.float32)

        # Gate layout (i, f, o, g): one contiguous sigmoid + one tanh per dir.
        sf = jax.nn.sigmoid(gf[:, :3 * H])
        gtf = jnp.tanh(gf[:, 3 * H:])
        c_f = sf[:, H:2 * H] * c_f + sf[:, :H] * gtf
        h_f = sf[:, 2 * H:] * jnp.tanh(c_f)

        sb = jax.nn.sigmoid(gb[:, :3 * H])
        gtb = jnp.tanh(gb[:, 3 * H:])
        c_b = sb[:, H:2 * H] * c_b + sb[:, :H] * gtb
        h_b = sb[:, 2 * H:] * jnp.tanh(c_b)

        out_f_ref[s] = h_f.astype(out_f_ref.dtype)
        out_b_ref[rev] = h_b.astype(out_b_ref.dtype)
        return h_f, c_f, h_b, c_b

    zeros = jnp.zeros((B, H), jnp.float32)
    lax.fori_loop(0, T, step, (zeros, zeros, zeros, zeros))


def pallas_bilstm_layer(xg, whh_f_t, whh_b_t, hidden):
    """One bidirectional LSTM layer.  xg: (T, B, 8H) -> (out_f, out_b) each (T, B, H)."""
    T, B, G8 = xg.shape
    H = hidden
    assert G8 == 8 * H
    return pl.pallas_call(
        _bilstm_layer_kernel,
        out_shape=(
            jax.ShapeDtypeStruct((T, B, H), jnp.float32),
            jax.ShapeDtypeStruct((T, B, H), jnp.float32),
        ),
        grid=(1,),
        in_specs=[
            pl.BlockSpec((T, B, G8), lambda i: (0, 0, 0)),
            pl.BlockSpec((H, 4 * H), lambda i: (0, 0)),
            pl.BlockSpec((H, 4 * H), lambda i: (0, 0)),
        ],
        out_specs=(
            pl.BlockSpec((T, B, H), lambda i: (0, 0, 0)),
            pl.BlockSpec((T, B, H), lambda i: (0, 0, 0)),
        ),
        compiler_params=pltpu.CompilerParams(dimension_semantics=("arbitrary",)),
    )(xg.astype(jnp.float32), whh_f_t.astype(jnp.float32), whh_b_t.astype(jnp.float32))


# ----------------------------------------------------------------------------
# Model glue (im2col, layer plumbing) — plain JAX, tiny tensors only
# ----------------------------------------------------------------------------
def conv3x3_s2_relu(x_nchw, wmat, bias):
    """Conv2d(k=3, s=2, p=1) + ReLU via im2col + Pallas matmul.

    x_nchw: (B, C, H, W); wmat: (Kpad, OC) bf16 with K = C*9 zero-padded to a
    multiple of 32; bias: (OC,) f32.
    Returns the feature sequence time-major: (T = OH*OW, B, OC) f32.
    """
    B, C, H, W = x_nchw.shape
    Kp, OC = wmat.shape
    OH = (H + 2 - 3) // 2 + 1
    OW = (W + 2 - 3) // 2 + 1
    xp = jnp.pad(x_nchw, ((0, 0), (0, 0), (1, 1), (1, 1)))
    cols = [xp[:, :, kh:kh + 2 * OH:2, kw:kw + 2 * OW:2]
            for kh in range(3) for kw in range(3)]          # each (B, C, OH, OW)
    patches = jnp.stack(cols, axis=2)                       # (B, C, 9, OH, OW)
    # rows ordered (oh, ow, b) so the matmul output lands directly in (T, B, OC)
    patches = patches.transpose(3, 4, 0, 1, 2).reshape(OH * OW * B, C * 9)
    patches = jnp.pad(patches, ((0, 0), (0, Kp - C * 9))).astype(jnp.bfloat16)
    out = pallas_linear(patches, wmat, bias, relu=True)     # (T*B, OC) f32
    return out.reshape(OH * OW, B, OC)


def bidir_lstm(seq_tbf, lstm_layers, hidden):
    """Bidirectional multi-layer LSTM, eval mode (inter-layer dropout = identity).

    seq_tbf: (T, B, F) time-major -> (T, B, 2*hidden) time-major.
    """
    T, B, _ = seq_tbf.shape
    x = seq_tbf
    for p in lstm_layers:
        F = x.shape[-1]
        # One fused input projection for BOTH directions (bf16 MXU, f32 acc).
        xg = pallas_linear(x.reshape(T * B, F).astype(jnp.bfloat16),
                           p["w_in"], p["bias"])            # (T*B, 8H) f32
        xg = xg.reshape(T, B, 8 * hidden)
        out_f, out_b = pallas_bilstm_layer(xg, p["whh_f"], p["whh_b"], hidden)
        x = jnp.concatenate([out_f, out_b], axis=-1)        # (T, B, 2H), fwd first
    return x


def cnn_rnn_forward(x_nchw, kp, *, hidden):
    feats = conv3x3_s2_relu(x_nchw, kp["conv_w"], kp["conv_b"])   # (T, B, C)
    rnn_out = bidir_lstm(feats, kp["lstm"], hidden)               # (T, B, 2H)
    last_output = rnn_out[-1]            # == rnn_out[:, -1, :] of batch-first torch
    # Classifier: Dropout (identity in eval) + Linear.  (2,64)@(64,8) is too
    # small for a pallas_call launch — let XLA fuse it.
    return jnp.dot(last_output, kp["cls_w"]) + kp["cls_b"]


# ----------------------------------------------------------------------------
# Parameters: torch-faithful init + conversion to kernel-ready layout
# ----------------------------------------------------------------------------
def init_params(key, *, in_ch, feature_dim, hidden, num_layers, num_classes):
    keys = iter(jax.random.split(key, 64))
    u = lambda k, shape, s: jax.random.uniform(k, shape, jnp.float32, -s, s)

    params = {}
    k_conv = 1.0 / jnp.sqrt(in_ch * 9.0)
    params["conv_w"] = u(next(keys), (feature_dim, in_ch, 3, 3), k_conv)
    params["conv_b"] = u(next(keys), (feature_dim,), k_conv)

    lstm = {}
    k_h = 1.0 / jnp.sqrt(float(hidden))
    for layer in range(num_layers):
        in_size = feature_dim if layer == 0 else 2 * hidden
        for direction in range(2):
            lstm[(layer, direction)] = {
                "w_ih": u(next(keys), (4 * hidden, in_size), k_h),
                "w_hh": u(next(keys), (4 * hidden, hidden), k_h),
                "b_ih": u(next(keys), (4 * hidden,), k_h),
                "b_hh": u(next(keys), (4 * hidden,), k_h),
            }
    params["lstm"] = lstm

    k_cls = 1.0 / jnp.sqrt(2.0 * hidden)
    params["cls_w"] = u(next(keys), (num_classes, 2 * hidden), k_cls)
    params["cls_b"] = u(next(keys), (num_classes,), k_cls)
    return params


def _reorder_ifgo_to_ifog(a, axis=0):
    """Permute PyTorch LSTM gate blocks (i, f, g, o) -> (i, f, o, g)."""
    i, f, g, o = jnp.split(a, 4, axis=axis)
    return jnp.concatenate([i, f, o, g], axis=axis)


def prepare_params(raw, *, hidden, num_layers):
    """Convert torch-layout params into kernel-ready fused/reordered params (done once)."""
    kp = {}
    # conv: (OC, C, 3, 3) -> (Kpad, OC) matmul weight, K padded to a multiple of 32
    w = raw["conv_w"]
    OC, C = w.shape[0], w.shape[1]
    K = C * 9
    Kp = ((K + 31) // 32) * 32
    wmat = jnp.pad(w.reshape(OC, K).T, ((0, Kp - K), (0, 0)))
    kp["conv_w"] = wmat.astype(jnp.bfloat16)
    kp["conv_b"] = raw["conv_b"].astype(jnp.float32)

    layers = []
    for layer in range(num_layers):
        pf = raw["lstm"][(layer, 0)]   # forward direction
        pb = raw["lstm"][(layer, 1)]   # backward direction
        w_in = jnp.concatenate(
            [_reorder_ifgo_to_ifog(pf["w_ih"]).T,
             _reorder_ifgo_to_ifog(pb["w_ih"]).T], axis=1)             # (F, 8H)
        bias = jnp.concatenate(
            [_reorder_ifgo_to_ifog(pf["b_ih"] + pf["b_hh"]),
             _reorder_ifgo_to_ifog(pb["b_ih"] + pb["b_hh"])])          # (8H,)
        layers.append({
            "w_in": w_in.astype(jnp.bfloat16),
            "bias": bias.astype(jnp.float32),
            "whh_f": _reorder_ifgo_to_ifog(pf["w_hh"]).T.astype(jnp.float32),  # (H, 4H)
            "whh_b": _reorder_ifgo_to_ifog(pb["w_hh"]).T.astype(jnp.float32),
        })
    kp["lstm"] = layers

    kp["cls_w"] = raw["cls_w"].T.astype(jnp.float32)   # (2H, num_classes)
    kp["cls_b"] = raw["cls_b"].astype(jnp.float32)
    return kp


# ----------------------------------------------------------------------------
if __name__ == "__main__":
    B, C_IN, H, W = 2, 3, 16, 16
    FEATURE_DIM = 32      # CNN backbone output channels
    RNN_HIDDEN = 32
    RNN_LAYERS = 2
    NUM_CLASSES = 8

    key = jax.random.PRNGKey(0)
    k_x, k_p = jax.random.split(key)
    x = jax.random.normal(k_x, (B, C_IN, H, W), jnp.float32)
    raw_params = init_params(
        k_p,
        in_ch=C_IN,
        feature_dim=FEATURE_DIM,
        hidden=RNN_HIDDEN,
        num_layers=RNN_LAYERS,
        num_classes=NUM_CLASSES,
    )
    kparams = prepare_params(raw_params, hidden=RNN_HIDDEN, num_layers=RNN_LAYERS)

    fwd = jax.jit(functools.partial(cnn_rnn_forward, hidden=RNN_HIDDEN))
    logits = fwd(x, kparams)
    jax.block_until_ready(logits)
    assert logits.shape == (B, NUM_CLASSES), logits.shape
    print("KERNEL_OK")
</pallas_src>

<mosaic_0001>
module attributes {stable_mosaic.version = 11 : i64} {
  func.func @_linear_kernel(%arg0: i32, %arg1: memref<128x32xbf16, #tpu.memory_space<vmem>>, %arg2: memref<32x32xbf16, #tpu.memory_space<vmem>>, %arg3: memref<1x32xf32, #tpu.memory_space<vmem>>, %arg4: memref<128x32xf32, #tpu.memory_space<vmem>>) attributes {dimension_semantics = [#tpu.dimension_semantics<arbitrary>], iteration_bounds = array<i64: 1>, scalar_prefetch = 0 : i64, scratch_operands = 0 : i64, tpu.core_type = #tpu.core_type<tc>, window_params = [{pipeline_mode = #tpu.pipeline_mode<synchronous>, transform_indices = @transform_0, window_bounds = array<i64: 128, 32>}, {pipeline_mode = #tpu.pipeline_mode<synchronous>, transform_indices = @transform_1, window_bounds = array<i64: 32, 32>}, {pipeline_mode = #tpu.pipeline_mode<synchronous>, transform_indices = @transform_2, window_bounds = array<i64: 1, 32>}, {pipeline_mode = #tpu.pipeline_mode<synchronous>, transform_indices = @transform_3, window_bounds = array<i64: 128, 32>}]} {
    %c0 = arith.constant 0 : index
    %c0_0 = arith.constant 0 : index
    %0 = vector.load %arg1[%c0, %c0_0] : memref<128x32xbf16, #tpu.memory_space<vmem>>, vector<128x32xbf16>
    %c0_1 = arith.constant 0 : index
    %c0_2 = arith.constant 0 : index
    %1 = vector.load %arg2[%c0_1, %c0_2] : memref<32x32xbf16, #tpu.memory_space<vmem>>, vector<32x32xbf16>
    %cst = arith.constant dense<0.000000e+00> : vector<128x32xf32>
    %2 = tpu.matmul %0, %1, %cst {dimension_numbers = #tpu.dot_dimension_numbers<[1], [0], [0], [1], [0, 0, 1, 1], [], []>} : vector<128x32xbf16>, vector<32x32xbf16>, vector<128x32xf32> -> vector<128x32xf32>
    %c0_3 = arith.constant 0 : index
    %c0_4 = arith.constant 0 : index
    %3 = vector.load %arg3[%c0_3, %c0_4] : memref<1x32xf32, #tpu.memory_space<vmem>>, vector<1x32xf32>
    %4 = vector.broadcast %3 : vector<1x32xf32> to vector<128x32xf32>
    %5 = arith.addf %2, %4 : vector<128x32xf32>
    %cst_5 = arith.constant 0.000000e+00 : f32
    %6 = vector.broadcast %cst_5 : f32 to vector<128x32xf32>
    %7 = arith.maximumf %5, %6 : vector<128x32xf32>
    %c0_6 = arith.constant 0 : index
    %c0_7 = arith.constant 0 : index
    %8 = vector.load %arg4[%c0_6, %c0_7] : memref<128x32xf32, #tpu.memory_space<vmem>>, vector<128x32xf32>
    tpu.vector_store %arg4[%c0_6, %c0_7], %7 {strides = array<i32>} : memref<128x32xf32, #tpu.memory_space<vmem>>, vector<128x32xf32>,
    return
  }
  func.func @transform_0(%arg0: i32) -> (i32, i32) {
    %c0_i32 = arith.constant 0 : i32
    %c0_i32_0 = arith.constant 0 : i32
    %c0_i32_1 = arith.constant 0 : i32
    return %c0_i32, %c0_i32_0 : i32, i32
  }
  func.func @transform_1(%arg0: i32) -> (i32, i32) {
    %c0_i32 = arith.constant 0 : i32
    %c0_i32_0 = arith.constant 0 : i32
    %c0_i32_1 = arith.constant 0 : i32
    return %c0_i32, %c0_i32_0 : i32, i32
  }
  func.func @transform_2(%arg0: i32) -> (i32, i32) {
    %c0_i32 = arith.constant 0 : i32
    %c0_i32_0 = arith.constant 0 : i32
    %c0_i32_1 = arith.constant 0 : i32
    return %c0_i32, %c0_i32_0 : i32, i32
  }
  func.func @transform_3(%arg0: i32) -> (i32, i32) {
    %c0_i32 = arith.constant 0 : i32
    %c0_i32_0 = arith.constant 0 : i32
    %c0_i32_1 = arith.constant 0 : i32
    return %c0_i32, %c0_i32_0 : i32, i32
  }
}

module attributes {stable_mosaic.version = 11 : i64} {
  func.func @_linear_kernel(%arg0: i32, %arg1: memref<128x32xbf16, #tpu.memory_space<vmem>>, %arg2: memref<32x256xbf16, #tpu.memory_space<vmem>>, %arg3: memref<1x256xf32, #tpu.memory_space<vmem>>, %arg4: memref<128x256xf32, #tpu.memory_space<vmem>>) attributes {dimension_semantics = [#tpu.dimension_semantics<arbitrary>], iteration_bounds = array<i64: 1>, scalar_prefetch = 0 : i64, scratch_operands = 0 : i64, tpu.core_type = #tpu.core_type<tc>, window_params = [{pipeline_mode = #tpu.pipeline_mode<synchronous>, transform_indices = @transform_0, window_bounds = array<i64: 128, 32>}, {pipeline_mode = #tpu.pipeline_mode<synchronous>, transform_indices = @transform_1, window_bounds = array<i64: 32, 256>}, {pipeline_mode = #tpu.pipeline_mode<synchronous>, transform_indices = @transform_2, window_bounds = array<i64: 1, 256>}, {pipeline_mode = #tpu.pipeline_mode<synchronous>, transform_indices = @transform_3, window_bounds = array<i64: 128, 256>}]} {
    %c0 = arith.constant 0 : index
    %c0_0 = arith.constant 0 : index
    %0 = vector.load %arg1[%c0, %c0_0] : memref<128x32xbf16, #tpu.memory_space<vmem>>, vector<128x32xbf16>
    %c0_1 = arith.constant 0 : index
    %c0_2 = arith.constant 0 : index
    %1 = vector.load %arg2[%c0_1, %c0_2] : memref<32x256xbf16, #tpu.memory_space<vmem>>, vector<32x256xbf16>
    %cst = arith.constant dense<0.000000e+00> : vector<128x256xf32>
    %2 = tpu.matmul %0, %1, %cst {dimension_numbers = #tpu.dot_dimension_numbers<[1], [0], [0], [1], [0, 0, 1, 1], [], []>} : vector<128x32xbf16>, vector<32x256xbf16>, vector<128x256xf32> -> vector<128x256xf32>
    %c0_3 = arith.constant 0 : index
    %c0_4 = arith.constant 0 : index
    %3 = vector.load %arg3[%c0_3, %c0_4] : memref<1x256xf32, #tpu.memory_space<vmem>>, vector<1x256xf32>
    %4 = vector.broadcast %3 : vector<1x256xf32> to vector<128x256xf32>
    %5 = arith.addf %2, %4 : vector<128x256xf32>
    %c0_5 = arith.constant 0 : index
    %c0_6 = arith.constant 0 : index
    %6 = vector.load %arg4[%c0_5, %c0_6] : memref<128x256xf32, #tpu.memory_space<vmem>>, vector<128x256xf32>
    tpu.vector_store %arg4[%c0_5, %c0_6], %5 {strides = array<i32>} : memref<128x256xf32, #tpu.memory_space<vmem>>, vector<128x256xf32>,
    return
  }
  func.func @transform_0(%arg0: i32) -> (i32, i32) {
    %c0_i32 = arith.constant 0 : i32
    %c0_i32_0 = arith.constant 0 : i32
    %c0_i32_1 = arith.constant 0 : i32
    return %c0_i32, %c0_i32_0 : i32, i32
  }
  func.func @transform_1(%arg0: i32) -> (i32, i32) {
    %c0_i32 = arith.constant 0 : i32
    %c0_i32_0 = arith.constant 0 : i32
    %c0_i32_1 = arith.constant 0 : i32
    return %c0_i32, %c0_i32_0 : i32, i32
  }
  func.func @transform_2(%arg0: i32) -> (i32, i32) {
    %c0_i32 = arith.constant 0 : i32
    %c0_i32_0 = arith.constant 0 : i32
    %c0_i32_1 = arith.constant 0 : i32
    return %c0_i32, %c0_i32_0 : i32, i32
  }
  func.func @transform_3(%arg0: i32) -> (i32, i32) {
    %c0_i32 = arith.constant 0 : i32
    %c0_i32_0 = arith.constant 0 : i32
    %c0_i32_1 = arith.constant 0 : i32
    return %c0_i32, %c0_i32_0 : i32, i32
  }
}

module attributes {stable_mosaic.version = 11 : i64} {
  func.func @_bilstm_layer_kernel(%arg0: i32, %arg1: memref<64x2x256xf32, #tpu.memory_space<vmem>>, %arg2: memref<32x128xf32, #tpu.memory_space<vmem>>, %arg3: memref<32x128xf32, #tpu.memory_space<vmem>>, %arg4: memref<64x2x32xf32, #tpu.memory_space<vmem>>, %arg5: memref<64x2x32xf32, #tpu.memory_space<vmem>>) attributes {dimension_semantics = [#tpu.dimension_semantics<arbitrary>], iteration_bounds = array<i64: 1>, scalar_prefetch = 0 : i64, scratch_operands = 0 : i64, tpu.core_type = #tpu.core_type<tc>, window_params = [{pipeline_mode = #tpu.pipeline_mode<synchronous>, transform_indices = @transform_0, window_bounds = array<i64: 64, 2, 256>}, {pipeline_mode = #tpu.pipeline_mode<synchronous>, transform_indices = @transform_1, window_bounds = array<i64: 32, 128>}, {pipeline_mode = #tpu.pipeline_mode<synchronous>, transform_indices = @transform_2, window_bounds = array<i64: 32, 128>}, {pipeline_mode = #tpu.pipeline_mode<synchronous>, transform_indices = @transform_3, window_bounds = array<i64: 64, 2, 32>}, {pipeline_mode = #tpu.pipeline_mode<synchronous>, transform_indices = @transform_4, window_bounds = array<i64: 64, 2, 32>}]} {
    %c0 = arith.constant 0 : index
    %c0_0 = arith.constant 0 : index
    %0 = vector.load %arg2[%c0, %c0_0] : memref<32x128xf32, #tpu.memory_space<vmem>>, vector<32x128xf32>
    %c0_1 = arith.constant 0 : index
    %c0_2 = arith.constant 0 : index
    %1 = vector.load %arg3[%c0_1, %c0_2] : memref<32x128xf32, #tpu.memory_space<vmem>>, vector<32x128xf32>
    %cst = arith.constant 0.000000e+00 : f32
    %2 = vector.broadcast %cst : f32 to vector<2x32xf32>
    %c0_i32 = arith.constant 0 : i32
    %c64_i32 = arith.constant 64 : i32
    %3 = arith.addi %c0_i32, %c64_i32 : i32
    %c1_i32 = arith.constant 1 : i32
    %4:4 = scf.for %arg6 = %c0_i32 to %3 step %c1_i32 iter_args(%arg7 = %2, %arg8 = %2, %arg9 = %2, %arg10 = %2) -> (vector<2x32xf32>, vector<2x32xf32>, vector<2x32xf32>, vector<2x32xf32>)  : i32 {
      %c63_i32 = arith.constant 63 : i32
      %5 = arith.subi %c63_i32, %arg6 : i32
      %6 = arith.index_cast %arg6 : i32 to index
      %c0_4 = arith.constant 0 : index
      %c0_5 = arith.constant 0 : index
      %7 = vector.load %arg1[%6, %c0_4, %c0_5] : memref<64x2x256xf32, #tpu.memory_space<vmem>>, vector<1x2x256xf32>
      %8 = vector.shape_cast %7 : vector<1x2x256xf32> to vector<2x256xf32>
      %9 = arith.index_cast %5 : i32 to index
      %c0_6 = arith.constant 0 : index
      %c0_7 = arith.constant 0 : index
      %10 = vector.load %arg1[%9, %c0_6, %c0_7] : memref<64x2x256xf32, #tpu.memory_space<vmem>>, vector<1x2x256xf32>
      %11 = vector.shape_cast %10 : vector<1x2x256xf32> to vector<2x256xf32>
      %12 = vector.extract_strided_slice %8 {offsets = [0, 0], sizes = [2, 128], strides = [1, 1]} : vector<2x256xf32> to vector<2x128xf32>
      %cst_8 = arith.constant dense<0.000000e+00> : vector<2x128xf32>
      %13 = tpu.matmul %arg7, %0, %cst_8 {dimension_numbers = #tpu.dot_dimension_numbers<[1], [0], [0], [1], [0, 0, 1, 1], [], []>} : vector<2x32xf32>, vector<32x128xf32>, vector<2x128xf32> -> vector<2x128xf32>
      %14 = arith.addf %12, %13 : vector<2x128xf32>
      %15 = vector.extract_strided_slice %11 {offsets = [0, 128], sizes = [2, 128], strides = [1, 1]} : vector<2x256xf32> to vector<2x128xf32>
      %cst_9 = arith.constant dense<0.000000e+00> : vector<2x128xf32>
      %16 = tpu.matmul %arg9, %1, %cst_9 {dimension_numbers = #tpu.dot_dimension_numbers<[1], [0], [0], [1], [0, 0, 1, 1], [], []>} : vector<2x32xf32>, vector<32x128xf32>, vector<2x128xf32> -> vector<2x128xf32>
      %17 = arith.addf %15, %16 : vector<2x128xf32>
      %18 = vector.extract_strided_slice %14 {offsets = [0, 0], sizes = [2, 96], strides = [1, 1]} : vector<2x128xf32> to vector<2x96xf32>
      %19 = arith.negf %18 : vector<2x96xf32>
      %20 = math.exp %19 : vector<2x96xf32>
      %cst_10 = arith.constant 1.000000e+00 : f32
      %21 = vector.broadcast %cst_10 : f32 to vector<2x96xf32>
      %22 = arith.addf %21, %20 : vector<2x96xf32>
      %23 = arith.divf %21, %22 : vector<2x96xf32>
      %24 = vector.extract_strided_slice %14 {offsets = [0, 96], sizes = [2, 32], strides = [1, 1]} : vector<2x128xf32> to vector<2x32xf32>
      %25 = math.tanh %24 : vector<2x32xf32>
      %26 = vector.extract_strided_slice %23 {offsets = [0, 32], sizes = [2, 32], strides = [1, 1]} : vector<2x96xf32> to vector<2x32xf32>
      %27 = arith.mulf %26, %arg8 : vector<2x32xf32>
      %28 = vector.extract_strided_slice %23 {offsets = [0, 0], sizes = [2, 32], strides = [1, 1]} : vector<2x96xf32> to vector<2x32xf32>
      %29 = arith.mulf %28, %25 : vector<2x32xf32>
      %30 = arith.addf %27, %29 : vector<2x32xf32>
      %31 = vector.extract_strided_slice %23 {offsets = [0, 64], sizes = [2, 32], strides = [1, 1]} : vector<2x96xf32> to vector<2x32xf32>
      %32 = math.tanh %30 : vector<2x32xf32>
      %33 = arith.mulf %31, %32 : vector<2x32xf32>
      %34 = vector.extract_strided_slice %17 {offsets = [0, 0], sizes = [2, 96], strides = [1, 1]} : vector<2x128xf32> to vector<2x96xf32>
      %35 = arith.negf %34 : vector<2x96xf32>
      %36 = math.exp %35 : vector<2x96xf32>
      %cst_11 = arith.constant 1.000000e+00 : f32
      %37 = vector.broadcast %cst_11 : f32 to vector<2x96xf32>
      %38 = arith.addf %37, %36 : vector<2x96xf32>
      %39 = arith.divf %37, %38 : vector<2x96xf32>
      %40 = vector.extract_strided_slice %17 {offsets = [0, 96], sizes = [2, 32], strides = [1, 1]} : vector<2x128xf32> to vector<2x32xf32>
      %41 = math.tanh %40 : vector<2x32xf32>
      %42 = vector.extract_strided_slice %39 {offsets = [0, 32], sizes = [2, 32], strides = [1, 1]} : vector<2x96xf32> to vector<2x32xf32>
      %43 = arith.mulf %42, %arg10 : vector<2x32xf32>
      %44 = vector.extract_strided_slice %39 {offsets = [0, 0], sizes = [2, 32], strides = [1, 1]} : vector<2x96xf32> to vector<2x32xf32>
      %45 = arith.mulf %44, %41 : vector<2x32xf32>
      %46 = arith.addf %43, %45 : vector<2x32xf32>
      %47 = vector.extract_strided_slice %39 {offsets = [0, 64], sizes = [2, 32], strides = [1, 1]} : vector<2x96xf32> to vector<2x32xf32>
      %48 = math.tanh %46 : vector<2x32xf32>
      %49 = arith.mulf %47, %48 : vector<2x32xf32>
      %50 = arith.index_cast %arg6 : i32 to index
      %c0_12 = arith.constant 0 : index
      %c0_13 = arith.constant 0 : index
      %51 = vector.load %arg4[%50, %c0_12, %c0_13] : memref<64x2x32xf32, #tpu.memory_space<vmem>>, vector<1x2x32xf32>
      %52 = vector.shape_cast %51 : vector<1x2x32xf32> to vector<2x32xf32>
      %53 = vector.shape_cast %33 : vector<2x32xf32> to vector<1x2x32xf32>
      tpu.vector_store %arg4[%50, %c0_12, %c0_13], %53 {strides = array<i32>} : memref<64x2x32xf32, #tpu.memory_space<vmem>>, vector<1x2x32xf32>,
      %54 = arith.index_cast %5 : i32 to index
      %c0_14 = arith.constant 0 : index
      %c0_15 = arith.constant 0 : index
      %55 = vector.load %arg5[%54, %c0_14, %c0_15] : memref<64x2x32xf32, #tpu.memory_space<vmem>>, vector<1x2x32xf32>
      %56 = vector.shape_cast %55 : vector<1x2x32xf32> to vector<2x32xf32>
      %57 = vector.shape_cast %49 : vector<2x32xf32> to vector<1x2x32xf32>
      tpu.vector_store %arg5[%54, %c0_14, %c0_15], %57 {strides = array<i32>} : memref<64x2x32xf32, #tpu.memory_space<vmem>>, vector<1x2x32xf32>,
      scf.yield %33, %30, %49, %46 : vector<2x32xf32>, vector<2x32xf32>, vector<2x32xf32>, vector<2x32xf32>
    }
    %c64_i32_3 = arith.constant 64 : i32
    return
  }
  func.func @transform_0(%arg0: i32) -> (i32, i32, i32) {
    %c0_i32 = arith.constant 0 : i32
    %c0_i32_0 = arith.constant 0 : i32
    %c0_i32_1 = arith.constant 0 : i32
    %c0_i32_2 = arith.constant 0 : i32
    return %c0_i32, %c0_i32_0, %c0_i32_1 : i32, i32, i32
  }
  func.func @transform_1(%arg0: i32) -> (i32, i32) {
    %c0_i32 = arith.constant 0 : i32
    %c0_i32_0 = arith.constant 0 : i32
    %c0_i32_1 = arith.constant 0 : i32
    return %c0_i32, %c0_i32_0 : i32, i32
  }
  func.func @transform_2(%arg0: i32) -> (i32, i32) {
    %c0_i32 = arith.constant 0 : i32
    %c0_i32_0 = arith.constant 0 : i32
    %c0_i32_1 = arith.constant 0 : i32
    return %c0_i32, %c0_i32_0 : i32, i32
  }
  func.func @transform_3(%arg0: i32) -> (i32, i32, i32) {
    %c0_i32 = arith.constant 0 : i32
    %c0_i32_0 = arith.constant 0 : i32
    %c0_i32_1 = arith.constant 0 : i32
    %c0_i32_2 = arith.constant 0 : i32
    return %c0_i32, %c0_i32_0, %c0_i32_1 : i32, i32, i32
  }
  func.func @transform_4(%arg0: i32) -> (i32, i32, i32) {
    %c0_i32 = arith.constant 0 : i32
    %c0_i32_0 = arith.constant 0 : i32
    %c0_i32_1 = arith.constant 0 : i32
    %c0_i32_2 = arith.constant 0 : i32
    return %c0_i32, %c0_i32_0, %c0_i32_1 : i32, i32, i32
  }
}

module attributes {stable_mosaic.version = 11 : i64} {
  func.func @_linear_kernel(%arg0: i32, %arg1: memref<128x64xbf16, #tpu.memory_space<vmem>>, %arg2: memref<64x256xbf16, #tpu.memory_space<vmem>>, %arg3: memref<1x256xf32, #tpu.memory_space<vmem>>, %arg4: memref<128x256xf32, #tpu.memory_space<vmem>>) attributes {dimension_semantics = [#tpu.dimension_semantics<arbitrary>], iteration_bounds = array<i64: 1>, scalar_prefetch = 0 : i64, scratch_operands = 0 : i64, tpu.core_type = #tpu.core_type<tc>, window_params = [{pipeline_mode = #tpu.pipeline_mode<synchronous>, transform_indices = @transform_0, window_bounds = array<i64: 128, 64>}, {pipeline_mode = #tpu.pipeline_mode<synchronous>, transform_indices = @transform_1, window_bounds = array<i64: 64, 256>}, {pipeline_mode = #tpu.pipeline_mode<synchronous>, transform_indices = @transform_2, window_bounds = array<i64: 1, 256>}, {pipeline_mode = #tpu.pipeline_mode<synchronous>, transform_indices = @transform_3, window_bounds = array<i64: 128, 256>}]} {
    %c0 = arith.constant 0 : index
    %c0_0 = arith.constant 0 : index
    %0 = vector.load %arg1[%c0, %c0_0] : memref<128x64xbf16, #tpu.memory_space<vmem>>, vector<128x64xbf16>
    %c0_1 = arith.constant 0 : index
    %c0_2 = arith.constant 0 : index
    %1 = vector.load %arg2[%c0_1, %c0_2] : memref<64x256xbf16, #tpu.memory_space<vmem>>, vector<64x256xbf16>
    %cst = arith.constant dense<0.000000e+00> : vector<128x256xf32>
    %2 = tpu.matmul %0, %1, %cst {dimension_numbers = #tpu.dot_dimension_numbers<[1], [0], [0], [1], [0, 0, 1, 1], [], []>} : vector<128x64xbf16>, vector<64x256xbf16>, vector<128x256xf32> -> vector<128x256xf32>
    %c0_3 = arith.constant 0 : index
    %c0_4 = arith.constant 0 : index
    %3 = vector.load %arg3[%c0_3, %c0_4] : memref<1x256xf32, #tpu.memory_space<vmem>>, vector<1x256xf32>
    %4 = vector.broadcast %3 : vector<1x256xf32> to vector<128x256xf32>
    %5 = arith.addf %2, %4 : vector<128x256xf32>
    %c0_5 = arith.constant 0 : index
    %c0_6 = arith.constant 0 : index
    %6 = vector.load %arg4[%c0_5, %c0_6] : memref<128x256xf32, #tpu.memory_space<vmem>>, vector<128x256xf32>
    tpu.vector_store %arg4[%c0_5, %c0_6], %5 {strides = array<i32>} : memref<128x256xf32, #tpu.memory_space<vmem>>, vector<128x256xf32>,
    return
  }
  func.func @transform_0(%arg0: i32) -> (i32, i32) {
    %c0_i32 = arith.constant 0 : i32
    %c0_i32_0 = arith.constant 0 : i32
    %c0_i32_1 = arith.constant 0 : i32
    return %c0_i32, %c0_i32_0 : i32, i32
  }
  func.func @transform_1(%arg0: i32) -> (i32, i32) {
    %c0_i32 = arith.constant 0 : i32
    %c0_i32_0 = arith.constant 0 : i32
    %c0_i32_1 = arith.constant 0 : i32
    return %c0_i32, %c0_i32_0 : i32, i32
  }
  func.func @transform_2(%arg0: i32) -> (i32, i32) {
    %c0_i32 = arith.constant 0 : i32
    %c0_i32_0 = arith.constant 0 : i32
    %c0_i32_1 = arith.constant 0 : i32
    return %c0_i32, %c0_i32_0 : i32, i32
  }
  func.func @transform_3(%arg0: i32) -> (i32, i32) {
    %c0_i32 = arith.constant 0 : i32
    %c0_i32_0 = arith.constant 0 : i32
    %c0_i32_1 = arith.constant 0 : i32
    return %c0_i32, %c0_i32_0 : i32, i32
  }
}

</mosaic_0001>

<llo_original>
// kernel: cnn_rnn_forward.5
$region0: #{cnn_rnn_forward.5}
  #allocation0 [shape = 'u32[]', space=smem, size = 0x4, offset = 0x4, fixed_abs, tag = 'smem constant byte address 0x4 - core index']
  #allocation1 [shape = 'u32[144,128]{1,0:T(1,128)}', space=vmem, size = 0x12000, scoped, tag = 'internal scratch']
  %s0 = inlined_call_operand.vmem [shape: bf16[128,32], index: 0, kind: input, shape index: {}]
  %s1 = inlined_call_operand.vmem [shape: bf16[32,32], index: 1, kind: input, shape index: {}]
  %s2 = inlined_call_operand.vmem [shape: f32[1,32], index: 2, kind: input, shape index: {}]
  %s3 = inlined_call_operand.vmem [shape: f32[128,32], index: 3, kind: output, shape index: {}]
  %s4 = sld [smem:[#allocation0]]
  $region22: #{cnn_rnn_forward.5} parent=0
    _
  %s6 = ssub.s32 1, %s4
  %s7 = scalar_select 0, %s6, %s4
  // Predicated region
  $region2: #{cnn_rnn_forward.5} parent=0 // pred_check
    _
  $region3: #{cnn_rnn_forward.5} parent=0 // pred_check_branch
    %9 = sbr.rel (0) target = $region5
  $region4: #{cnn_rnn_forward.5} parent=0 // pred_region
    _
  $region5: #{cnn_rnn_forward.5} parent=0 // pred_fallthru
    _
  // Predicated region
  $region6: #{cnn_rnn_forward.5} parent=0 // pred_check
    _
  $region7: #{cnn_rnn_forward.5} parent=0 // pred_check_branch
    %11 = sbr.rel (0) target = $region9
  $region8: #{cnn_rnn_forward.5} parent=0 // pred_region
    _
  $region9: #{cnn_rnn_forward.5} parent=0 // pred_fallthru
    _
  // Predicated region
  $region10: #{cnn_rnn_forward.5} parent=0 // pred_check
    _
  $region11: #{cnn_rnn_forward.5} parent=0 // pred_check_branch
    %13 = sbr.rel (0) target = $region13
  $region12: #{cnn_rnn_forward.5} parent=0 // pred_region
    _
  $region13: #{cnn_rnn_forward.5} parent=0 // pred_fallthru
    _
  %v15 = vld [vmem:[%s0] sm:$0xf]
  %v16 = vld [vmem:[%s0 + $0x4] sm:$0xf]
  %v17 = vld [vmem:[%s0 + $0x8] sm:$0xf]
  %v18 = vld [vmem:[%s0 + $0xc] sm:$0xf]
  %v19 = vld [vmem:[%s0 + $0x10] sm:$0xf]
  %v20 = vld [vmem:[%s0 + $0x14] sm:$0xf]
  %v21 = vld [vmem:[%s0 + $0x18] sm:$0xf]
  %v22 = vld [vmem:[%s0 + $0x1c] sm:$0xf]
  %v23 = vld [vmem:[%s0 + $0x20] sm:$0xf]
  %v24 = vld [vmem:[%s0 + $0x24] sm:$0xf]
  %v25 = vld [vmem:[%s0 + $0x28] sm:$0xf]
  %v26 = vld [vmem:[%s0 + $0x2c] sm:$0xf]
  %v27 = vld [vmem:[%s0 + $0x30] sm:$0xf]
  %v28 = vld [vmem:[%s0 + $0x34] sm:$0xf]
  %v29 = vld [vmem:[%s0 + $0x38] sm:$0xf]
  %v30 = vld [vmem:[%s0 + $0x3c] sm:$0xf]
  %v31 = vld [vmem:[%s1] sm:$0xf]
  %v32 = vld [vmem:[%s1 + $0x4] sm:$0xf]
  %v33 = vld [vmem:[%s1 + $0x8] sm:$0xf]
  %v34 = vld [vmem:[%s1 + $0xc] sm:$0xf]
  %v35 = vld [vmem:[%s2] sm:$0x1]
  %v37 = vlaneseq
  %v38 = vshrl.u32 %v37, 7
  %v39 = vsub.s32 0, %v38
  %v40 = vrot.slane %v35, %v39
  %v58 = vunpack.c.l.b16 %v15
  %v59 = vunpack.c.l.b16 %v16
  %v60 = vunpack.c.l.b16 %v17
  %v61 = vunpack.c.l.b16 %v18
  %v62 = vunpack.c.l.b16 %v19
  %v63 = vunpack.c.l.b16 %v20
  %v64 = vunpack.c.l.b16 %v21
  %v65 = vunpack.c.l.b16 %v22
  %v66 = vunpack.c.l.b16 %v23
  %v67 = vunpack.c.l.b16 %v24
  %v68 = vunpack.c.l.b16 %v25
  %v69 = vunpack.c.l.b16 %v26
  %v70 = vunpack.c.l.b16 %v27
  %v71 = vunpack.c.l.b16 %v28
  %v72 = vunpack.c.l.b16 %v29
  %v73 = vunpack.c.l.b16 %v30
  %v74 = vpack.c.b16 %v59, %v58
  %v75 = vpack.c.b16 %v61, %v60
  %v76 = vpack.c.b16 %v63, %v62
  %v77 = vpack.c.b16 %v65, %v64
  %v78 = vpack.c.b16 %v67, %v66
  %v79 = vpack.c.b16 %v69, %v68
  %v80 = vpack.c.b16 %v71, %v70
  %v81 = vpack.c.b16 %v73, %v72
  %v86 = vunpack.c.l.b16 %v31
  %v87 = vunpack.c.l.b16 %v32
  %v88 = vunpack.c.l.b16 %v33
  %v89 = vunpack.c.l.b16 %v34
  %v90 = vpack.c.b16 %v87, %v86
  %v91 = vpack.c.b16 %v89, %v88
  %vm94 = vcmask 261120
  %v96 = vsel %vm94, %v74, 0
  %v99 = vsel %vm94, %v75, 0
  %v102 = vsel %vm94, %v76, 0
  %v105 = vsel %vm94, %v77, 0
  %v108 = vsel %vm94, %v78, 0
  %v111 = vsel %vm94, %v79, 0
  %v114 = vsel %vm94, %v80, 0
  %v117 = vsel %vm94, %v81, 0
  %119 = vmatprep.subr.bf16.mxu0 0
  %120 = vmatpush1.bf16.msra.mxu0 0
  %121 = vmatprep.subr.bf16.mxu0 0
  %122 = vmatpush1.bf16.msra.mxu0 0
  %123 = vmatprep.subr.bf16.mxu0 0
  %124 = vmatpush1.bf16.msra.mxu0 0
  %125 = vmatprep.subr.bf16.mxu0 0
  %126 = vmatpush1.bf16.msra.mxu0 0
  %127 = vmatprep.subr.bf16.mxu0 0
  %128 = vmatpush1.bf16.msra.mxu0 0
  %129 = vmatprep.subr.bf16.mxu0 0
  %130 = vmatpush1.bf16.msra.mxu0 0
  %131 = vmatprep.subr.bf16.mxu0 0
  %132 = vmatpush1.bf16.msra.mxu0 %v91
  %133 = vmatprep.subr.bf16.mxu0 0
  %134 = vmatpush1.bf16.msra.mxu0 %v90
  %135 = vmatprep.subr.bf16.mxu0 0
  %136 = vmatpush2.bf16.msra.mxu0 0
  %137 = vmatprep.subr.bf16.mxu0 0
  %138 = vmatpush2.bf16.msra.mxu0 0
  %139 = vmatprep.subr.bf16.mxu0 0
  %140 = vmatpush2.bf16.msra.mxu0 0
  %141 = vmatprep.subr.bf16.mxu0 0
  %142 = vmatpush2.bf16.msra.mxu0 0
  %143 = vmatprep.subr.bf16.mxu0 0
  %144 = vmatpush2.bf16.msra.mxu0 0
  %145 = vmatprep.subr.bf16.mxu0 0
  %146 = vmatpush2.bf16.msra.mxu0 0
  %147 = vmatprep.subr.bf16.mxu0 0
  %148 = vmatpush2.bf16.msra.mxu0 0
  %149 = vmatprep.subr.bf16.mxu0 0
  %150 = vmatpush2.bf16.msra.mxu0 0
  %151 = vmatprep.mubr.bf16.mxu0 0
  %152 = vmatmul.mubr.bf16.gmra.mxu0 %v96
  %v153 = vpop.f32.mrf.mxu0
  %v154 = vadd.f32 %v40, %v153
  %v155 = vpop.f32.mrf.mxu0
  %v156 = vpop.f32.mrf.mxu0
  %v157 = vadd.f32 %v40, %v156
  %v158 = vpop.f32.mrf.mxu0
  %159 = vmatprep.mubr.bf16.mxu0 0
  %160 = vmatmul.mubr.bf16.gmra.mxu0 %v99
  %v161 = vpop.f32.mrf.mxu0
  %v162 = vadd.f32 %v40, %v161
  %v163 = vpop.f32.mrf.mxu0
  %v164 = vpop.f32.mrf.mxu0
  %v165 = vadd.f32 %v40, %v164
  %v166 = vpop.f32.mrf.mxu0
  %167 = vmatprep.mubr.bf16.mxu0 0
  %168 = vmatmul.mubr.bf16.gmra.mxu0 %v102
  %v169 = vpop.f32.mrf.mxu0
  %v170 = vadd.f32 %v40, %v169
  %v171 = vpop.f32.mrf.mxu0
  %v172 = vpop.f32.mrf.mxu0
  %v173 = vadd.f32 %v40, %v172
  %v174 = vpop.f32.mrf.mxu0
  %175 = vmatprep.mubr.bf16.mxu0 0
  %176 = vmatmul.mubr.bf16.gmra.mxu0 %v105
  %v177 = vpop.f32.mrf.mxu0
  %v178 = vadd.f32 %v40, %v177
  %v179 = vpop.f32.mrf.mxu0
  %v180 = vpop.f32.mrf.mxu0
  %v181 = vadd.f32 %v40, %v180
  %v182 = vpop.f32.mrf.mxu0
  %183 = vmatprep.mubr.bf16.mxu0 0
  %184 = vmatmul.mubr.bf16.gmra.mxu0 %v108
  %v185 = vpop.f32.mrf.mxu0
  %v186 = vadd.f32 %v40, %v185
  %v187 = vpop.f32.mrf.mxu0
  %v188 = vpop.f32.mrf.mxu0
  %v189 = vadd.f32 %v40, %v188
  %v190 = vpop.f32.mrf.mxu0
  %191 = vmatprep.mubr.bf16.mxu0 0
  %192 = vmatmul.mubr.bf16.gmra.mxu0 %v111
  %v193 = vpop.f32.mrf.mxu0
  %v194 = vadd.f32 %v40, %v193
  %v195 = vpop.f32.mrf.mxu0
  %v196 = vpop.f32.mrf.mxu0
  %v197 = vadd.f32 %v40, %v196
  %v198 = vpop.f32.mrf.mxu0
  %199 = vmatprep.mubr.bf16.mxu0 0
  %200 = vmatmul.mubr.bf16.gmra.mxu0 %v114
  %v201 = vpop.f32.mrf.mxu0
  %v202 = vadd.f32 %v40, %v201
  %v203 = vpop.f32.mrf.mxu0
  %v204 = vpop.f32.mrf.mxu0
  %v205 = vadd.f32 %v40, %v204
  %v206 = vpop.f32.mrf.mxu0
  %207 = vmatprep.mubr.bf16.mxu0 0
  %208 = vmatmul.mubr.bf16.gmra.mxu0 %v117
  %v209 = vpop.f32.mrf.mxu0
  %v210 = vadd.f32 %v40, %v209
  %v211 = vpop.f32.mrf.mxu0
  %v212 = vpop.f32.mrf.mxu0
  %v213 = vadd.f32 %v40, %v212
  %v214 = vpop.f32.mrf.mxu0
  %215 = vdwg.mxu0
  %v216 = vmax.f32 %v154, 0.0
  %v217 = vmax.f32 %v157, 0.0
  %v218 = vmax.f32 %v162, 0.0
  %v219 = vmax.f32 %v165, 0.0
  %v220 = vmax.f32 %v170, 0.0
  %v221 = vmax.f32 %v173, 0.0
  %v222 = vmax.f32 %v178, 0.0
  %v223 = vmax.f32 %v181, 0.0
  %v224 = vmax.f32 %v186, 0.0
  %v225 = vmax.f32 %v189, 0.0
  %v226 = vmax.f32 %v194, 0.0
  %v227 = vmax.f32 %v197, 0.0
  %v228 = vmax.f32 %v202, 0.0
  %v229 = vmax.f32 %v205, 0.0
  %v230 = vmax.f32 %v210, 0.0
  %v231 = vmax.f32 %v213, 0.0
  %232 = vst.msk [vmem:[%s3] sm:$0xff] %vm94, %v216
  %233 = vst.msk [vmem:[%s3 + $0x8] sm:$0xff] %vm94, %v217
  %234 = vst.msk [vmem:[%s3 + $0x10] sm:$0xff] %vm94, %v218
  %235 = vst.msk [vmem:[%s3 + $0x18] sm:$0xff] %vm94, %v219
  %236 = vst.msk [vmem:[%s3 + $0x20] sm:$0xff] %vm94, %v220
  %237 = vst.msk [vmem:[%s3 + $0x28] sm:$0xff] %vm94, %v221
  %238 = vst.msk [vmem:[%s3 + $0x30] sm:$0xff] %vm94, %v222
  %239 = vst.msk [vmem:[%s3 + $0x38] sm:$0xff] %vm94, %v223
  %240 = vst.msk [vmem:[%s3 + $0x40] sm:$0xff] %vm94, %v224
  %241 = vst.msk [vmem:[%s3 + $0x48] sm:$0xff] %vm94, %v225
  %242 = vst.msk [vmem:[%s3 + $0x50] sm:$0xff] %vm94, %v226
  %243 = vst.msk [vmem:[%s3 + $0x58] sm:$0xff] %vm94, %v227
  %244 = vst.msk [vmem:[%s3 + $0x60] sm:$0xff] %vm94, %v228
  %245 = vst.msk [vmem:[%s3 + $0x68] sm:$0xff] %vm94, %v229
  %246 = vst.msk [vmem:[%s3 + $0x70] sm:$0xff] %vm94, %v230
  %247 = vst.msk [vmem:[%s3 + $0x78] sm:$0xff] %vm94, %v231
  // Predicated region
  $region14: #{cnn_rnn_forward.5} parent=0 // pred_check
    _
  $region15: #{cnn_rnn_forward.5} parent=0 // pred_check_branch
    %249 = sbr.rel (0) target = $region17
  $region16: #{cnn_rnn_forward.5} parent=0 // pred_region
    _
  $region17: #{cnn_rnn_forward.5} parent=0 // pred_fallthru
    _
  // Predicated region
  $region18: #{cnn_rnn_forward.5} parent=0 // pred_check
    _
  $region19: #{cnn_rnn_forward.5} parent=0 // pred_check_branch
    %251 = sbr.rel (0) target = $region21
  $region20: #{cnn_rnn_forward.5} parent=0 // pred_region
    _
  $region21: #{cnn_rnn_forward.5} parent=0 // pred_fallthru
    _

// kernel: cnn_rnn_forward.6
$region0: #{cnn_rnn_forward.6}
  #allocation0 [shape = 'u32[]', space=smem, size = 0x4, offset = 0x4, fixed_abs, tag = 'smem constant byte address 0x4 - core index']
  #allocation1 [shape = 'u32[144,128]{1,0:T(1,128)}', space=vmem, size = 0x12000, scoped, tag = 'internal scratch']
  %s0 = inlined_call_operand.vmem [shape: bf16[128,32], index: 0, kind: input, shape index: {}]
  %s1 = inlined_call_operand.vmem [shape: bf16[32,256], index: 1, kind: input, shape index: {}]
  %s2 = inlined_call_operand.vmem [shape: f32[1,256], index: 2, kind: input, shape index: {}]
  %s3 = inlined_call_operand.vmem [shape: f32[128,256], index: 3, kind: output, shape index: {}]
  %s4 = sld [smem:[#allocation0]]
  $region22: #{cnn_rnn_forward.6} parent=0
    _
  %s6 = ssub.s32 1, %s4
  %s7 = scalar_select 0, %s6, %s4
  // Predicated region
  $region2: #{cnn_rnn_forward.6} parent=0 // pred_check
    _
  $region3: #{cnn_rnn_forward.6} parent=0 // pred_check_branch
    %9 = sbr.rel (0) target = $region5
  $region4: #{cnn_rnn_forward.6} parent=0 // pred_region
    _
  $region5: #{cnn_rnn_forward.6} parent=0 // pred_fallthru
    _
  // Predicated region
  $region6: #{cnn_rnn_forward.6} parent=0 // pred_check
    _
  $region7: #{cnn_rnn_forward.6} parent=0 // pred_check_branch
    %11 = sbr.rel (0) target = $region9
  $region8: #{cnn_rnn_forward.6} parent=0 // pred_region
    _
  $region9: #{cnn_rnn_forward.6} parent=0 // pred_fallthru
    _
  // Predicated region
  $region10: #{cnn_rnn_forward.6} parent=0 // pred_check
    _
  $region11: #{cnn_rnn_forward.6} parent=0 // pred_check_branch
    %13 = sbr.rel (0) target = $region13
  $region12: #{cnn_rnn_forward.6} parent=0 // pred_region
    _
  $region13: #{cnn_rnn_forward.6} parent=0 // pred_fallthru
    _
  %v15 = vld [vmem:[%s0] sm:$0xf]
  %v16 = vld [vmem:[%s0 + $0x4] sm:$0xf]
  %v17 = vld [vmem:[%s0 + $0x8] sm:$0xf]
  %v18 = vld [vmem:[%s0 + $0xc] sm:$0xf]
  %v19 = vld [vmem:[%s0 + $0x10] sm:$0xf]
  %v20 = vld [vmem:[%s0 + $0x14] sm:$0xf]
  %v21 = vld [vmem:[%s0 + $0x18] sm:$0xf]
  %v22 = vld [vmem:[%s0 + $0x1c] sm:$0xf]
  %v23 = vld [vmem:[%s0 + $0x20] sm:$0xf]
  %v24 = vld [vmem:[%s0 + $0x24] sm:$0xf]
  %v25 = vld [vmem:[%s0 + $0x28] sm:$0xf]
  %v26 = vld [vmem:[%s0 + $0x2c] sm:$0xf]
  %v27 = vld [vmem:[%s0 + $0x30] sm:$0xf]
  %v28 = vld [vmem:[%s0 + $0x34] sm:$0xf]
  %v29 = vld [vmem:[%s0 + $0x38] sm:$0xf]
  %v30 = vld [vmem:[%s0 + $0x3c] sm:$0xf]
  %v31 = vld [vmem:[%s1] sm:$0xff]
  %v32 = vld [vmem:[%s1 + $0x8] sm:$0xff]
  %v33 = vld [vmem:[%s1 + $0x10] sm:$0xff]
  %v34 = vld [vmem:[%s1 + $0x18] sm:$0xff]
  %v35 = vld [vmem:[%s2] sm:$0x3]
  %v37 = vlaneseq
  %v38 = vshrl.u32 %v37, 7
  %v39 = vsub.s32 0, %v38
  %v40 = vrot.slane %v35, %v39
  %v41 = vlaneseq
  %v42 = vshrl.u32 %v41, 7
  %v43 = vsub.s32 1, %v42
  %v44 = vrot.slane %v35, %v43
  %v63 = vunpack.c.l.b16 %v15
  %v64 = vunpack.c.l.b16 %v16
  %v65 = vunpack.c.l.b16 %v17
  %v66 = vunpack.c.l.b16 %v18
  %v67 = vunpack.c.l.b16 %v19
  %v68 = vunpack.c.l.b16 %v20
  %v69 = vunpack.c.l.b16 %v21
  %v70 = vunpack.c.l.b16 %v22
  %v71 = vunpack.c.l.b16 %v23
  %v72 = vunpack.c.l.b16 %v24
  %v73 = vunpack.c.l.b16 %v25
  %v74 = vunpack.c.l.b16 %v26
  %v75 = vunpack.c.l.b16 %v27
  %v76 = vunpack.c.l.b16 %v28
  %v77 = vunpack.c.l.b16 %v29
  %v78 = vunpack.c.l.b16 %v30
  %v79 = vpack.c.b16 %v64, %v63
  %v80 = vpack.c.b16 %v66, %v65
  %v81 = vpack.c.b16 %v68, %v67
  %v82 = vpack.c.b16 %v70, %v69
  %v83 = vpack.c.b16 %v72, %v71
  %v84 = vpack.c.b16 %v74, %v73
  %v85 = vpack.c.b16 %v76, %v75
  %v86 = vpack.c.b16 %v78, %v77
  %v91 = vunpack.c.l.b16 %v31
  %v92 = vunpack.c.h.b16 %v31
  %v93 = vunpack.c.l.b16 %v32
  %v94 = vunpack.c.h.b16 %v32
  %v95 = vunpack.c.l.b16 %v33
  %v96 = vunpack.c.h.b16 %v33
  %v97 = vunpack.c.l.b16 %v34
  %v98 = vunpack.c.h.b16 %v34
  %v99 = vpack.c.b16 %v93, %v91
  %v100 = vpack.c.b16 %v94, %v92
  %v101 = vpack.c.b16 %v97, %v95
  %v102 = vpack.c.b16 %v98, %v96
  %vm107 = vcmask 261120
  %v109 = vsel %vm107, %v79, 0
  %v112 = vsel %vm107, %v80, 0
  %v115 = vsel %vm107, %v81, 0
  %v118 = vsel %vm107, %v82, 0
  %v121 = vsel %vm107, %v83, 0
  %v124 = vsel %vm107, %v84, 0
  %v127 = vsel %vm107, %v85, 0
  %v130 = vsel %vm107, %v86, 0
  %132 = vmatprep.subr.bf16.mxu0 0
  %133 = vmatpush1.bf16.msra.mxu0 0
  %134 = vmatprep.subr.bf16.mxu0 0
  %135 = vmatpush1.bf16.msra.mxu0 0
  %136 = vmatprep.subr.bf16.mxu0 0
  %137 = vmatpush1.bf16.msra.mxu0 0
  %138 = vmatprep.subr.bf16.mxu0 0
  %139 = vmatpush1.bf16.msra.mxu0 0
  %140 = vmatprep.subr.bf16.mxu0 0
  %141 = vmatpush1.bf16.msra.mxu0 0
  %142 = vmatprep.subr.bf16.mxu0 0
  %143 = vmatpush1.bf16.msra.mxu0 0
  %144 = vmatprep.subr.bf16.mxu0 %v102
  %145 = vmatpush1.bf16.msra.mxu0 %v101
  %146 = vmatprep.subr.bf16.mxu0 %v100
  %147 = vmatpush1.bf16.msra.mxu0 %v99
  %148 = vmatprep.subr.bf16.mxu0 0
  %149 = vmatpush2.bf16.msra.mxu0 0
  %150 = vmatprep.subr.bf16.mxu0 0
  %151 = vmatpush2.bf16.msra.mxu0 0
  %152 = vmatprep.subr.bf16.mxu0 0
  %153 = vmatpush2.bf16.msra.mxu0 0
  %154 = vmatprep.subr.bf16.mxu0 0
  %155 = vmatpush2.bf16.msra.mxu0 0
  %156 = vmatprep.subr.bf16.mxu0 0
  %157 = vmatpush2.bf16.msra.mxu0 0
  %158 = vmatprep.subr.bf16.mxu0 0
  %159 = vmatpush2.bf16.msra.mxu0 0
  %160 = vmatprep.subr.bf16.mxu0 0
  %161 = vmatpush2.bf16.msra.mxu0 0
  %162 = vmatprep.subr.bf16.mxu0 0
  %163 = vmatpush2.bf16.msra.mxu0 0
  %164 = vmatprep.mubr.bf16.mxu0 0
  %165 = vmatmul.mubr.bf16.gmra.mxu0 %v109
  %v166 = vpop.f32.mrf.mxu0
  %v167 = vadd.f32 %v40, %v166
  %v168 = vpop.f32.mrf.mxu0
  %v169 = vadd.f32 %v44, %v168
  %v170 = vpop.f32.mrf.mxu0
  %v171 = vadd.f32 %v40, %v170
  %v172 = vpop.f32.mrf.mxu0
  %v173 = vadd.f32 %v44, %v172
  %174 = vmatprep.mubr.bf16.mxu0 0
  %175 = vmatmul.mubr.bf16.gmra.mxu0 %v112
  %v176 = vpop.f32.mrf.mxu0
  %v177 = vadd.f32 %v40, %v176
  %v178 = vpop.f32.mrf.mxu0
  %v179 = vadd.f32 %v44, %v178
  %v180 = vpop.f32.mrf.mxu0
  %v181 = vadd.f32 %v40, %v180
  %v182 = vpop.f32.mrf.mxu0
  %v183 = vadd.f32 %v44, %v182
  %184 = vmatprep.mubr.bf16.mxu0 0
  %185 = vmatmul.mubr.bf16.gmra.mxu0 %v115
  %v186 = vpop.f32.mrf.mxu0
  %v187 = vadd.f32 %v40, %v186
  %v188 = vpop.f32.mrf.mxu0
  %v189 = vadd.f32 %v44, %v188
  %v190 = vpop.f32.mrf.mxu0
  %v191 = vadd.f32 %v40, %v190
  %v192 = vpop.f32.mrf.mxu0
  %v193 = vadd.f32 %v44, %v192
  %194 = vmatprep.mubr.bf16.mxu0 0
  %195 = vmatmul.mubr.bf16.gmra.mxu0 %v118
  %v196 = vpop.f32.mrf.mxu0
  %v197 = vadd.f32 %v40, %v196
  %v198 = vpop.f32.mrf.mxu0
  %v199 = vadd.f32 %v44, %v198
  %v200 = vpop.f32.mrf.mxu0
  %v201 = vadd.f32 %v40, %v200
  %v202 = vpop.f32.mrf.mxu0
  %v203 = vadd.f32 %v44, %v202
  %204 = vmatprep.mubr.bf16.mxu0 0
  %205 = vmatmul.mubr.bf16.gmra.mxu0 %v121
  %v206 = vpop.f32.mrf.mxu0
  %v207 = vadd.f32 %v40, %v206
  %v208 = vpop.f32.mrf.mxu0
  %v209 = vadd.f32 %v44, %v208
  %v210 = vpop.f32.mrf.mxu0
  %v211 = vadd.f32 %v40, %v210
  %v212 = vpop.f32.mrf.mxu0
  %v213 = vadd.f32 %v44, %v212
  %214 = vmatprep.mubr.bf16.mxu0 0
  %215 = vmatmul.mubr.bf16.gmra.mxu0 %v124
  %v216 = vpop.f32.mrf.mxu0
  %v217 = vadd.f32 %v40, %v216
  %v218 = vpop.f32.mrf.mxu0
  %v219 = vadd.f32 %v44, %v218
  %v220 = vpop.f32.mrf.mxu0
  %v221 = vadd.f32 %v40, %v220
  %v222 = vpop.f32.mrf.mxu0
  %v223 = vadd.f32 %v44, %v222
  %224 = vmatprep.mubr.bf16.mxu0 0
  %225 = vmatmul.mubr.bf16.gmra.mxu0 %v127
  %v226 = vpop.f32.mrf.mxu0
  %v227 = vadd.f32 %v40, %v226
  %v228 = vpop.f32.mrf.mxu0
  %v229 = vadd.f32 %v44, %v228
  %v230 = vpop.f32.mrf.mxu0
  %v231 = vadd.f32 %v40, %v230
  %v232 = vpop.f32.mrf.mxu0
  %v233 = vadd.f32 %v44, %v232
  %234 = vmatprep.mubr.bf16.mxu0 0
  %235 = vmatmul.mubr.bf16.gmra.mxu0 %v130
  %v236 = vpop.f32.mrf.mxu0
  %v237 = vadd.f32 %v40, %v236
  %v238 = vpop.f32.mrf.mxu0
  %v239 = vadd.f32 %v44, %v238
  %v240 = vpop.f32.mrf.mxu0
  %v241 = vadd.f32 %v40, %v240
  %v242 = vpop.f32.mrf.mxu0
  %v243 = vadd.f32 %v44, %v242
  %244 = vdwg.mxu0
  %245 = vst [vmem:[%s3] sm:$0xff] %v167
  %246 = vst [vmem:[%s3 + $0x8] sm:$0xff] %v169
  %247 = vst [vmem:[%s3 + $0x10] sm:$0xff] %v171
  %248 = vst [vmem:[%s3 + $0x18] sm:$0xff] %v173
  %249 = vst [vmem:[%s3 + $0x20] sm:$0xff] %v177
  %250 = vst [vmem:[%s3 + $0x28] sm:$0xff] %v179
  %251 = vst [vmem:[%s3 + $0x30] sm:$0xff] %v181
  %252 = vst [vmem:[%s3 + $0x38] sm:$0xff] %v183
  %253 = vst [vmem:[%s3 + $0x40] sm:$0xff] %v187
  %254 = vst [vmem:[%s3 + $0x48] sm:$0xff] %v189
  %255 = vst [vmem:[%s3 + $0x50] sm:$0xff] %v191
  %256 = vst [vmem:[%s3 + $0x58] sm:$0xff] %v193
  %257 = vst [vmem:[%s3 + $0x60] sm:$0xff] %v197
  %258 = vst [vmem:[%s3 + $0x68] sm:$0xff] %v199
  %259 = vst [vmem:[%s3 + $0x70] sm:$0xff] %v201
  %260 = vst [vmem:[%s3 + $0x78] sm:$0xff] %v203
  %261 = vst [vmem:[%s3 + $0x80] sm:$0xff] %v207
  %262 = vst [vmem:[%s3 + $0x88] sm:$0xff] %v209
  %263 = vst [vmem:[%s3 + $0x90] sm:$0xff] %v211
  %264 = vst [vmem:[%s3 + $0x98] sm:$0xff] %v213
  %265 = vst [vmem:[%s3 + $0xa0] sm:$0xff] %v217
  %266 = vst [vmem:[%s3 + $0xa8] sm:$0xff] %v219
  %267 = vst [vmem:[%s3 + $0xb0] sm:$0xff] %v221
  %268 = vst [vmem:[%s3 + $0xb8] sm:$0xff] %v223
  %269 = vst [vmem:[%s3 + $0xc0] sm:$0xff] %v227
  %270 = vst [vmem:[%s3 + $0xc8] sm:$0xff] %v229
  %271 = vst [vmem:[%s3 + $0xd0] sm:$0xff] %v231
  %272 = vst [vmem:[%s3 + $0xd8] sm:$0xff] %v233
  %273 = vst [vmem:[%s3 + $0xe0] sm:$0xff] %v237
  %274 = vst [vmem:[%s3 + $0xe8] sm:$0xff] %v239
  %275 = vst [vmem:[%s3 + $0xf0] sm:$0xff] %v241
  %276 = vst [vmem:[%s3 + $0xf8] sm:$0xff] %v243
  // Predicated region
  $region14: #{cnn_rnn_forward.6} parent=0 // pred_check
    _
  $region15: #{cnn_rnn_forward.6} parent=0 // pred_check_branch
    %278 = sbr.rel (0) target = $region17
  $region16: #{cnn_rnn_forward.6} parent=0 // pred_region
    _
  $region17: #{cnn_rnn_forward.6} parent=0 // pred_fallthru
    _
  // Predicated region
  $region18: #{cnn_rnn_forward.6} parent=0 // pred_check
    _
  $region19: #{cnn_rnn_forward.6} parent=0 // pred_check_branch
    %280 = sbr.rel (0) target = $region21
  $region20: #{cnn_rnn_forward.6} parent=0 // pred_region
    _
  $region21: #{cnn_rnn_forward.6} parent=0 // pred_fallthru
    _

// kernel: cnn_rnn_forward.8
$region0: #{cnn_rnn_forward.8}
  #allocation0 [shape = 'u32[]', space=smem, size = 0x4, offset = 0x4, fixed_abs, tag = 'smem constant byte address 0x4 - core index']
  #allocation1 [shape = 'u32[144,128]{1,0:T(1,128)}', space=vmem, size = 0x12000, scoped, tag = 'internal scratch']
  %s0 = inlined_call_operand.vmem [shape: bf16[128,64], index: 0, kind: input, shape index: {}]
  %s1 = inlined_call_operand.vmem [shape: bf16[64,256], index: 1, kind: input, shape index: {}]
  %s2 = inlined_call_operand.vmem [shape: f32[1,256], index: 2, kind: input, shape index: {}]
  %s3 = inlined_call_operand.vmem [shape: f32[128,256], index: 3, kind: output, shape index: {}]
  %s4 = sld [smem:[#allocation0]]
  $region22: #{cnn_rnn_forward.8} parent=0
    _
  %s6 = ssub.s32 1, %s4
  %s7 = scalar_select 0, %s6, %s4
  // Predicated region
  $region2: #{cnn_rnn_forward.8} parent=0 // pred_check
    _
  $region3: #{cnn_rnn_forward.8} parent=0 // pred_check_branch
    %9 = sbr.rel (0) target = $region5
  $region4: #{cnn_rnn_forward.8} parent=0 // pred_region
    _
  $region5: #{cnn_rnn_forward.8} parent=0 // pred_fallthru
    _
  // Predicated region
  $region6: #{cnn_rnn_forward.8} parent=0 // pred_check
    _
  $region7: #{cnn_rnn_forward.8} parent=0 // pred_check_branch
    %11 = sbr.rel (0) target = $region9
  $region8: #{cnn_rnn_forward.8} parent=0 // pred_region
    _
  $region9: #{cnn_rnn_forward.8} parent=0 // pred_fallthru
    _
  // Predicated region
  $region10: #{cnn_rnn_forward.8} parent=0 // pred_check
    _
  $region11: #{cnn_rnn_forward.8} parent=0 // pred_check_branch
    %13 = sbr.rel (0) target = $region13
  $region12: #{cnn_rnn_forward.8} parent=0 // pred_region
    _
  $region13: #{cnn_rnn_forward.8} parent=0 // pred_fallthru
    _
  %v15 = vld [vmem:[%s0] sm:$0xf]
  %v16 = vld [vmem:[%s0 + $0x4] sm:$0xf]
  %v17 = vld [vmem:[%s0 + $0x8] sm:$0xf]
  %v18 = vld [vmem:[%s0 + $0xc] sm:$0xf]
  %v19 = vld [vmem:[%s0 + $0x10] sm:$0xf]
  %v20 = vld [vmem:[%s0 + $0x14] sm:$0xf]
  %v21 = vld [vmem:[%s0 + $0x18] sm:$0xf]
  %v22 = vld [vmem:[%s0 + $0x1c] sm:$0xf]
  %v23 = vld [vmem:[%s0 + $0x20] sm:$0xf]
  %v24 = vld [vmem:[%s0 + $0x24] sm:$0xf]
  %v25 = vld [vmem:[%s0 + $0x28] sm:$0xf]
  %v26 = vld [vmem:[%s0 + $0x2c] sm:$0xf]
  %v27 = vld [vmem:[%s0 + $0x30] sm:$0xf]
  %v28 = vld [vmem:[%s0 + $0x34] sm:$0xf]
  %v29 = vld [vmem:[%s0 + $0x38] sm:$0xf]
  %v30 = vld [vmem:[%s0 + $0x3c] sm:$0xf]
  %v31 = vld [vmem:[%s1] sm:$0xff]
  %v32 = vld [vmem:[%s1 + $0x8] sm:$0xff]
  %v33 = vld [vmem:[%s1 + $0x10] sm:$0xff]
  %v34 = vld [vmem:[%s1 + $0x18] sm:$0xff]
  %v35 = vld [vmem:[%s1 + $0x20] sm:$0xff]
  %v36 = vld [vmem:[%s1 + $0x28] sm:$0xff]
  %v37 = vld [vmem:[%s1 + $0x30] sm:$0xff]
  %v38 = vld [vmem:[%s1 + $0x38] sm:$0xff]
  %v39 = vld [vmem:[%s2] sm:$0x3]
  %v41 = vlaneseq
  %v42 = vshrl.u32 %v41, 7
  %v43 = vsub.s32 0, %v42
  %v44 = vrot.slane %v39, %v43
  %v45 = vlaneseq
  %v46 = vshrl.u32 %v45, 7
  %v47 = vsub.s32 1, %v46
  %v48 = vrot.slane %v39, %v47
  %v67 = vunpack.c.l.b16 %v15
  %v68 = vunpack.c.l.b16 %v16
  %v69 = vunpack.c.l.b16 %v17
  %v70 = vunpack.c.l.b16 %v18
  %v71 = vunpack.c.l.b16 %v19
  %v72 = vunpack.c.l.b16 %v20
  %v73 = vunpack.c.l.b16 %v21
  %v74 = vunpack.c.l.b16 %v22
  %v75 = vunpack.c.l.b16 %v23
  %v76 = vunpack.c.l.b16 %v24
  %v77 = vunpack.c.l.b16 %v25
  %v78 = vunpack.c.l.b16 %v26
  %v79 = vunpack.c.l.b16 %v27
  %v80 = vunpack.c.l.b16 %v28
  %v81 = vunpack.c.l.b16 %v29
  %v82 = vunpack.c.l.b16 %v30
  %v83 = vpack.c.b16 %v68, %v67
  %v84 = vpack.c.b16 %v70, %v69
  %v85 = vpack.c.b16 %v72, %v71
  %v86 = vpack.c.b16 %v74, %v73
  %v87 = vpack.c.b16 %v76, %v75
  %v88 = vpack.c.b16 %v78, %v77
  %v89 = vpack.c.b16 %v80, %v79
  %v90 = vpack.c.b16 %v82, %v81
  %v99 = vunpack.c.l.b16 %v31
  %v100 = vunpack.c.h.b16 %v31
  %v101 = vunpack.c.l.b16 %v32
  %v102 = vunpack.c.h.b16 %v32
  %v103 = vunpack.c.l.b16 %v33
  %v104 = vunpack.c.h.b16 %v33
  %v105 = vunpack.c.l.b16 %v34
  %v106 = vunpack.c.h.b16 %v34
  %v107 = vunpack.c.l.b16 %v35
  %v108 = vunpack.c.h.b16 %v35
  %v109 = vunpack.c.l.b16 %v36
  %v110 = vunpack.c.h.b16 %v36
  %v111 = vunpack.c.l.b16 %v37
  %v112 = vunpack.c.h.b16 %v37
  %v113 = vunpack.c.l.b16 %v38
  %v114 = vunpack.c.h.b16 %v38
  %v115 = vpack.c.b16 %v101, %v99
  %v116 = vpack.c.b16 %v102, %v100
  %v117 = vpack.c.b16 %v105, %v103
  %v118 = vpack.c.b16 %v106, %v104
  %v119 = vpack.c.b16 %v109, %v107
  %v120 = vpack.c.b16 %v110, %v108
  %v121 = vpack.c.b16 %v113, %v111
  %v122 = vpack.c.b16 %v114, %v112
  %vm131 = vcmask 523264
  %v133 = vsel %vm131, %v83, 0
  %v136 = vsel %vm131, %v84, 0
  %v139 = vsel %vm131, %v85, 0
  %v142 = vsel %vm131, %v86, 0
  %v145 = vsel %vm131, %v87, 0
  %v148 = vsel %vm131, %v88, 0
  %v151 = vsel %vm131, %v89, 0
  %v154 = vsel %vm131, %v90, 0
  %156 = vmatprep.subr.bf16.mxu0 0
  %157 = vmatpush1.bf16.msra.mxu0 0
  %158 = vmatprep.subr.bf16.mxu0 0
  %159 = vmatpush1.bf16.msra.mxu0 0
  %160 = vmatprep.subr.bf16.mxu0 0
  %161 = vmatpush1.bf16.msra.mxu0 0
  %162 = vmatprep.subr.bf16.mxu0 0
  %163 = vmatpush1.bf16.msra.mxu0 0
  %164 = vmatprep.subr.bf16.mxu0 %v122
  %165 = vmatpush1.bf16.msra.mxu0 %v121
  %166 = vmatprep.subr.bf16.mxu0 %v120
  %167 = vmatpush1.bf16.msra.mxu0 %v119
  %168 = vmatprep.subr.bf16.mxu0 %v118
  %169 = vmatpush1.bf16.msra.mxu0 %v117
  %170 = vmatprep.subr.bf16.mxu0 %v116
  %171 = vmatpush1.bf16.msra.mxu0 %v115
  %172 = vmatprep.subr.bf16.mxu0 0
  %173 = vmatpush2.bf16.msra.mxu0 0
  %174 = vmatprep.subr.bf16.mxu0 0
  %175 = vmatpush2.bf16.msra.mxu0 0
  %176 = vmatprep.subr.bf16.mxu0 0
  %177 = vmatpush2.bf16.msra.mxu0 0
  %178 = vmatprep.subr.bf16.mxu0 0
  %179 = vmatpush2.bf16.msra.mxu0 0
  %180 = vmatprep.subr.bf16.mxu0 0
  %181 = vmatpush2.bf16.msra.mxu0 0
  %182 = vmatprep.subr.bf16.mxu0 0
  %183 = vmatpush2.bf16.msra.mxu0 0
  %184 = vmatprep.subr.bf16.mxu0 0
  %185 = vmatpush2.bf16.msra.mxu0 0
  %186 = vmatprep.subr.bf16.mxu0 0
  %187 = vmatpush2.bf16.msra.mxu0 0
  %188 = vmatprep.mubr.bf16.mxu0 0
  %189 = vmatmul.mubr.bf16.gmra.mxu0 %v133
  %v190 = vpop.f32.mrf.mxu0
  %v191 = vadd.f32 %v44, %v190
  %v192 = vpop.f32.mrf.mxu0
  %v193 = vadd.f32 %v48, %v192
  %v194 = vpop.f32.mrf.mxu0
  %v195 = vadd.f32 %v44, %v194
  %v196 = vpop.f32.mrf.mxu0
  %v197 = vadd.f32 %v48, %v196
  %198 = vmatprep.mubr.bf16.mxu0 0
  %199 = vmatmul.mubr.bf16.gmra.mxu0 %v136
  %v200 = vpop.f32.mrf.mxu0
  %v201 = vadd.f32 %v44, %v200
  %v202 = vpop.f32.mrf.mxu0
  %v203 = vadd.f32 %v48, %v202
  %v204 = vpop.f32.mrf.mxu0
  %v205 = vadd.f32 %v44, %v204
  %v206 = vpop.f32.mrf.mxu0
  %v207 = vadd.f32 %v48, %v206
  %208 = vmatprep.mubr.bf16.mxu0 0
  %209 = vmatmul.mubr.bf16.gmra.mxu0 %v139
  %v210 = vpop.f32.mrf.mxu0
  %v211 = vadd.f32 %v44, %v210
  %v212 = vpop.f32.mrf.mxu0
  %v213 = vadd.f32 %v48, %v212
  %v214 = vpop.f32.mrf.mxu0
  %v215 = vadd.f32 %v44, %v214
  %v216 = vpop.f32.mrf.mxu0
  %v217 = vadd.f32 %v48, %v216
  %218 = vmatprep.mubr.bf16.mxu0 0
  %219 = vmatmul.mubr.bf16.gmra.mxu0 %v142
  %v220 = vpop.f32.mrf.mxu0
  %v221 = vadd.f32 %v44, %v220
  %v222 = vpop.f32.mrf.mxu0
  %v223 = vadd.f32 %v48, %v222
  %v224 = vpop.f32.mrf.mxu0
  %v225 = vadd.f32 %v44, %v224
  %v226 = vpop.f32.mrf.mxu0
  %v227 = vadd.f32 %v48, %v226
  %228 = vmatprep.mubr.bf16.mxu0 0
  %229 = vmatmul.mubr.bf16.gmra.mxu0 %v145
  %v230 = vpop.f32.mrf.mxu0
  %v231 = vadd.f32 %v44, %v230
  %v232 = vpop.f32.mrf.mxu0
  %v233 = vadd.f32 %v48, %v232
  %v234 = vpop.f32.mrf.mxu0
  %v235 = vadd.f32 %v44, %v234
  %v236 = vpop.f32.mrf.mxu0
  %v237 = vadd.f32 %v48, %v236
  %238 = vmatprep.mubr.bf16.mxu0 0
  %239 = vmatmul.mubr.bf16.gmra.mxu0 %v148
  %v240 = vpop.f32.mrf.mxu0
  %v241 = vadd.f32 %v44, %v240
  %v242 = vpop.f32.mrf.mxu0
  %v243 = vadd.f32 %v48, %v242
  %v244 = vpop.f32.mrf.mxu0
  %v245 = vadd.f32 %v44, %v244
  %v246 = vpop.f32.mrf.mxu0
  %v247 = vadd.f32 %v48, %v246
  %248 = vmatprep.mubr.bf16.mxu0 0
  %249 = vmatmul.mubr.bf16.gmra.mxu0 %v151
  %v250 = vpop.f32.mrf.mxu0
  %v251 = vadd.f32 %v44, %v250
  %v252 = vpop.f32.mrf.mxu0
  %v253 = vadd.f32 %v48, %v252
  %v254 = vpop.f32.mrf.mxu0
  %v255 = vadd.f32 %v44, %v254
  %v256 = vpop.f32.mrf.mxu0
  %v257 = vadd.f32 %v48, %v256
  %258 = vmatprep.mubr.bf16.mxu0 0
  %259 = vmatmul.mubr.bf16.gmra.mxu0 %v154
  %v260 = vpop.f32.mrf.mxu0
  %v261 = vadd.f32 %v44, %v260
  %v262 = vpop.f32.mrf.mxu0
  %v263 = vadd.f32 %v48, %v262
  %v264 = vpop.f32.mrf.mxu0
  %v265 = vadd.f32 %v44, %v264
  %v266 = vpop.f32.mrf.mxu0
  %v267 = vadd.f32 %v48, %v266
  %268 = vdwg.mxu0
  %269 = vst [vmem:[%s3] sm:$0xff] %v191
  %270 = vst [vmem:[%s3 + $0x8] sm:$0xff] %v193
  %271 = vst [vmem:[%s3 + $0x10] sm:$0xff] %v195
  %272 = vst [vmem:[%s3 + $0x18] sm:$0xff] %v197
  %273 = vst [vmem:[%s3 + $0x20] sm:$0xff] %v201
  %274 = vst [vmem:[%s3 + $0x28] sm:$0xff] %v203
  %275 = vst [vmem:[%s3 + $0x30] sm:$0xff] %v205
  %276 = vst [vmem:[%s3 + $0x38] sm:$0xff] %v207
  %277 = vst [vmem:[%s3 + $0x40] sm:$0xff] %v211
  %278 = vst [vmem:[%s3 + $0x48] sm:$0xff] %v213
  %279 = vst [vmem:[%s3 + $0x50] sm:$0xff] %v215
  %280 = vst [vmem:[%s3 + $0x58] sm:$0xff] %v217
  %281 = vst [vmem:[%s3 + $0x60] sm:$0xff] %v221
  %282 = vst [vmem:[%s3 + $0x68] sm:$0xff] %v223
  %283 = vst [vmem:[%s3 + $0x70] sm:$0xff] %v225
  %284 = vst [vmem:[%s3 + $0x78] sm:$0xff] %v227
  %285 = vst [vmem:[%s3 + $0x80] sm:$0xff] %v231
  %286 = vst [vmem:[%s3 + $0x88] sm:$0xff] %v233
  %287 = vst [vmem:[%s3 + $0x90] sm:$0xff] %v235
  %288 = vst [vmem:[%s3 + $0x98] sm:$0xff] %v237
  %289 = vst [vmem:[%s3 + $0xa0] sm:$0xff] %v241
  %290 = vst [vmem:[%s3 + $0xa8] sm:$0xff] %v243
  %291 = vst [vmem:[%s3 + $0xb0] sm:$0xff] %v245
  %292 = vst [vmem:[%s3 + $0xb8] sm:$0xff] %v247
  %293 = vst [vmem:[%s3 + $0xc0] sm:$0xff] %v251
  %294 = vst [vmem:[%s3 + $0xc8] sm:$0xff] %v253
  %295 = vst [vmem:[%s3 + $0xd0] sm:$0xff] %v255
  %296 = vst [vmem:[%s3 + $0xd8] sm:$0xff] %v257
  %297 = vst [vmem:[%s3 + $0xe0] sm:$0xff] %v261
  %298 = vst [vmem:[%s3 + $0xe8] sm:$0xff] %v263
  %299 = vst [vmem:[%s3 + $0xf0] sm:$0xff] %v265
  %300 = vst [vmem:[%s3 + $0xf8] sm:$0xff] %v267
  // Predicated region
  $region14: #{cnn_rnn_forward.8} parent=0 // pred_check
    _
  $region15: #{cnn_rnn_forward.8} parent=0 // pred_check_branch
    %302 = sbr.rel (0) target = $region17
  $region16: #{cnn_rnn_forward.8} parent=0 // pred_region
    _
  $region17: #{cnn_rnn_forward.8} parent=0 // pred_fallthru
    _
  // Predicated region
  $region18: #{cnn_rnn_forward.8} parent=0 // pred_check
    _
  $region19: #{cnn_rnn_forward.8} parent=0 // pred_check_branch
    %304 = sbr.rel (0) target = $region21
  $region20: #{cnn_rnn_forward.8} parent=0 // pred_region
    _
  $region21: #{cnn_rnn_forward.8} parent=0 // pred_fallthru
    _

// kernel: cnn_rnn_forward.7
$region0: #{cnn_rnn_forward.7}
  #allocation0 [shape = 'u32[]', space=smem, size = 0x4, offset = 0x4, fixed_abs, tag = 'smem constant byte address 0x4 - core index']
  #allocation1 [shape = 'u32[144,128]{1,0:T(1,128)}', space=vmem, size = 0x12000, scoped, tag = 'internal scratch']
  %s0 = inlined_call_operand.vmem [shape: f32[64,2,256], index: 0, kind: input, shape index: {}]
  %s1 = inlined_call_operand.vmem [shape: f32[32,128], index: 1, kind: input, shape index: {}]
  %s2 = inlined_call_operand.vmem [shape: f32[32,128], index: 2, kind: input, shape index: {}]
  %s3 = inlined_call_operand.vmem [shape: f32[64,2,32], index: 3, kind: output, shape index: {0}]
  %s4 = inlined_call_operand.vmem [shape: f32[64,2,32], index: 4, kind: output, shape index: {1}]
  %5 = xla_tuple %s3, %s4
  %s6 = sld [smem:[#allocation0]]
  $region37: #{cnn_rnn_forward.7} parent=0
    _
  %s8 = ssub.s32 1, %s6
  %s9 = scalar_select 0, %s8, %s6
  // Predicated region
  $region2: #{cnn_rnn_forward.7} parent=0 // pred_check
    _
  $region3: #{cnn_rnn_forward.7} parent=0 // pred_check_branch
    %11 = sbr.rel (0) target = $region5
  $region4: #{cnn_rnn_forward.7} parent=0 // pred_region
    _
  $region5: #{cnn_rnn_forward.7} parent=0 // pred_fallthru
    _
  // Predicated region
  $region6: #{cnn_rnn_forward.7} parent=0 // pred_check
    _
  $region7: #{cnn_rnn_forward.7} parent=0 // pred_check_branch
    %13 = sbr.rel (0) target = $region9
  $region8: #{cnn_rnn_forward.7} parent=0 // pred_region
    _
  $region9: #{cnn_rnn_forward.7} parent=0 // pred_fallthru
    _
  // Predicated region
  $region10: #{cnn_rnn_forward.7} parent=0 // pred_check
    _
  $region11: #{cnn_rnn_forward.7} parent=0 // pred_check_branch
    %15 = sbr.rel (0) target = $region13
  $region12: #{cnn_rnn_forward.7} parent=0 // pred_region
    _
  $region13: #{cnn_rnn_forward.7} parent=0 // pred_fallthru
    _
  %v16 = vld [vmem:[%s1] sm:$0xff]
  %v17 = vld [vmem:[%s1 + $0x8] sm:$0xff]
  %v18 = vld [vmem:[%s1 + $0x10] sm:$0xff]
  %v19 = vld [vmem:[%s1 + $0x18] sm:$0xff]
  %v20 = vld [vmem:[%s2] sm:$0xff]
  %v21 = vld [vmem:[%s2 + $0x8] sm:$0xff]
  %v22 = vld [vmem:[%s2 + $0x10] sm:$0xff]
  %v23 = vld [vmem:[%s2 + $0x18] sm:$0xff]
  loop: start=0, step=1, limit=64
  $region14: #{cnn_rnn_forward.7} parent=0 // loop_pre_header
    _
  $region15: #{cnn_rnn_forward.7} parent=0 // loop_header
    %s25 = sphi 0, %s29
    %p26 = scmp.ge.s32.totalorder %s25, 64
    %v30 = vphi 0.0, %v236
    %v31 = vphi 0.0, %v230
    %v32 = vphi 0.0, %v260
    %v33 = vphi 0.0, %v254
  $region16: #{cnn_rnn_forward.7} parent=0 // loop_header_branch
    %28 = sbr.rel (%p26) target = $region20
  $region17: #{cnn_rnn_forward.7} parent=0 // loop_body
    %s34 = ssub.s32 63, %s25
    %s35 = smul.u32 %s25, 2
    %s36 = smul.addr %s35, 2
    %s37 = scalar_lea.vmem %s0, %s36
    %v38 = vld [vmem:[%s37] sm:$0xf]
    %s39 = smul.u32 %s34, 2
    %s40 = smul.addr %s39, 2
    %s41 = scalar_lea.vmem %s0, %s40
    %v42 = vld [vmem:[%s41] sm:$0xf]
    %v45 = vunpack.c.l.s4 1983009808
    %v46 = vunpack.c.0.s8 %v45
    %v47 = vlaneseq
    %v48 = vshrl.u32 %v47, 7
    %v49 = vsub.s32 %v46, %v48
    %v50 = vrot.slane %v30, %v49
    %51 = vrot.lane.b32.xlu0 %v50, 64
    %v52 = vpop.permute.xlu0 %51
    %vm53 = vcmask 261120
    %v54 = vsel %vm53, %v52, 0
    %56 = vmatprep.subr.mxu0 0.0
    %57 = vmatpush1.msra.mxu0 0.0
    %58 = vmatprep.subr.mxu0 0.0
    %59 = vmatpush1.msra.mxu0 0.0
    %60 = vmatprep.subr.mxu0 0.0
    %61 = vmatpush1.msra.mxu0 0.0
    %62 = vmatprep.subr.mxu0 0.0
    %63 = vmatpush1.msra.mxu0 0.0
    %64 = vmatprep.subr.mxu0 0.0
    %65 = vmatpush1.msra.mxu0 0.0
    %66 = vmatprep.subr.mxu0 0.0
    %67 = vmatpush1.msra.mxu0 0.0
    %68 = vmatprep.subr.mxu0 0.0
    %69 = vmatpush1.msra.mxu0 0.0
    %70 = vmatprep.subr.mxu0 0.0
    %71 = vmatpush1.msra.mxu0 0.0
    %72 = vmatprep.subr.mxu0 0.0
    %73 = vmatpush1.msra.mxu0 0.0
    %74 = vmatprep.subr.mxu0 0.0
    %75 = vmatpush1.msra.mxu0 0.0
    %76 = vmatprep.subr.mxu0 0.0
    %77 = vmatpush1.msra.mxu0 0.0
    %78 = vmatprep.subr.mxu0 0.0
    %79 = vmatpush1.msra.mxu0 0.0
    %80 = vmatprep.subr.mxu0 0.0
    %81 = vmatpush1.msra.mxu0 %v19
    %82 = vmatprep.subr.mxu0 0.0
    %83 = vmatpush1.msra.mxu0 %v18
    %84 = vmatprep.subr.mxu0 0.0
    %85 = vmatpush1.msra.mxu0 %v17
    %86 = vmatprep.subr.mxu0 0.0
    %87 = vmatpush1.msra.mxu0 %v16
    %88 = vmatprep.subr.mxu0 0.0
    %89 = vmatpush2.msra.mxu0 0.0
    %90 = vmatprep.subr.mxu0 0.0
    %91 = vmatpush2.msra.mxu0 0.0
    %92 = vmatprep.subr.mxu0 0.0
    %93 = vmatpush2.msra.mxu0 0.0
    %94 = vmatprep.subr.mxu0 0.0
    %95 = vmatpush2.msra.mxu0 0.0
    %96 = vmatprep.subr.mxu0 0.0
    %97 = vmatpush2.msra.mxu0 0.0
    %98 = vmatprep.subr.mxu0 0.0
    %99 = vmatpush2.msra.mxu0 0.0
    %100 = vmatprep.subr.mxu0 0.0
    %101 = vmatpush2.msra.mxu0 0.0
    %102 = vmatprep.subr.mxu0 0.0
    %103 = vmatpush2.msra.mxu0 0.0
    %104 = vmatprep.subr.mxu0 0.0
    %105 = vmatpush2.msra.mxu0 0.0
    %106 = vmatprep.subr.mxu0 0.0
    %107 = vmatpush2.msra.mxu0 0.0
    %108 = vmatprep.subr.mxu0 0.0
    %109 = vmatpush2.msra.mxu0 0.0
    %110 = vmatprep.subr.mxu0 0.0
    %111 = vmatpush2.msra.mxu0 0.0
    %112 = vmatprep.subr.mxu0 0.0
    %113 = vmatpush2.msra.mxu0 0.0
    %114 = vmatprep.subr.mxu0 0.0
    %115 = vmatpush2.msra.mxu0 0.0
    %116 = vmatprep.subr.mxu0 0.0
    %117 = vmatpush2.msra.mxu0 0.0
    %118 = vmatprep.subr.mxu0 0.0
    %119 = vmatpush2.msra.mxu0 0.0
    %120 = vmatprep.mubr.f32.mxu0 0.0
    %121 = vmatmul.mubr.f32.gmra.mxu0 %v54
    %v122 = vpop.f32.mrf.mxu0
    %v123 = vadd.f32 0.0, %v122
    %v124 = vpop.f32.mrf.mxu0
    %125 = vdwg.mxu0
    %v126 = vadd.f32 %v38, %v123
    %v129 = vunpack.c.l.s4 1983009808
    %v130 = vunpack.c.0.s8 %v129
    %v131 = vlaneseq
    %v132 = vshrl.u32 %v131, 7
    %v133 = vsub.s32 %v130, %v132
    %v134 = vrot.slane %v32, %v133
    %135 = vrot.lane.b32.xlu0 %v134, 64
    %v136 = vpop.permute.xlu0 %135
    %v137 = vsel %vm53, %v136, 0
    %139 = vmatprep.subr.mxu0 0.0
    %140 = vmatpush1.msra.mxu0 0.0
    %141 = vmatprep.subr.mxu0 0.0
    %142 = vmatpush1.msra.mxu0 0.0
    %143 = vmatprep.subr.mxu0 0.0
    %144 = vmatpush1.msra.mxu0 0.0
    %145 = vmatprep.subr.mxu0 0.0
    %146 = vmatpush1.msra.mxu0 0.0
    %147 = vmatprep.subr.mxu0 0.0
    %148 = vmatpush1.msra.mxu0 0.0
    %149 = vmatprep.subr.mxu0 0.0
    %150 = vmatpush1.msra.mxu0 0.0
    %151 = vmatprep.subr.mxu0 0.0
    %152 = vmatpush1.msra.mxu0 0.0
    %153 = vmatprep.subr.mxu0 0.0
    %154 = vmatpush1.msra.mxu0 0.0
    %155 = vmatprep.subr.mxu0 0.0
    %156 = vmatpush1.msra.mxu0 0.0
    %157 = vmatprep.subr.mxu0 0.0
    %158 = vmatpush1.msra.mxu0 0.0
    %159 = vmatprep.subr.mxu0 0.0
    %160 = vmatpush1.msra.mxu0 0.0
    %161 = vmatprep.subr.mxu0 0.0
    %162 = vmatpush1.msra.mxu0 0.0
    %163 = vmatprep.subr.mxu0 0.0
    %164 = vmatpush1.msra.mxu0 %v23
    %165 = vmatprep.subr.mxu0 0.0
    %166 = vmatpush1.msra.mxu0 %v22
    %167 = vmatprep.subr.mxu0 0.0
    %168 = vmatpush1.msra.mxu0 %v21
    %169 = vmatprep.subr.mxu0 0.0
    %170 = vmatpush1.msra.mxu0 %v20
    %171 = vmatprep.subr.mxu0 0.0
    %172 = vmatpush2.msra.mxu0 0.0
    %173 = vmatprep.subr.mxu0 0.0
    %174 = vmatpush2.msra.mxu0 0.0
    %175 = vmatprep.subr.mxu0 0.0
    %176 = vmatpush2.msra.mxu0 0.0
    %177 = vmatprep.subr.mxu0 0.0
    %178 = vmatpush2.msra.mxu0 0.0
    %179 = vmatprep.subr.mxu0 0.0
    %180 = vmatpush2.msra.mxu0 0.0
    %181 = vmatprep.subr.mxu0 0.0
    %182 = vmatpush2.msra.mxu0 0.0
    %183 = vmatprep.subr.mxu0 0.0
    %184 = vmatpush2.msra.mxu0 0.0
    %185 = vmatprep.subr.mxu0 0.0
    %186 = vmatpush2.msra.mxu0 0.0
    %187 = vmatprep.subr.mxu0 0.0
    %188 = vmatpush2.msra.mxu0 0.0
    %189 = vmatprep.subr.mxu0 0.0
    %190 = vmatpush2.msra.mxu0 0.0
    %191 = vmatprep.subr.mxu0 0.0
    %192 = vmatpush2.msra.mxu0 0.0
    %193 = vmatprep.subr.mxu0 0.0
    %194 = vmatpush2.msra.mxu0 0.0
    %195 = vmatprep.subr.mxu0 0.0
    %196 = vmatpush2.msra.mxu0 0.0
    %197 = vmatprep.subr.mxu0 0.0
    %198 = vmatpush2.msra.mxu0 0.0
    %199 = vmatprep.subr.mxu0 0.0
    %200 = vmatpush2.msra.mxu0 0.0
    %201 = vmatprep.subr.mxu0 0.0
    %202 = vmatpush2.msra.mxu0 0.0
    %203 = vmatprep.mubr.f32.mxu0 0.0
    %204 = vmatmul.mubr.f32.gmra.mxu0 %v137
    %v205 = vpop.f32.mrf.mxu0
    %v206 = vadd.f32 0.0, %v205
    %v207 = vpop.f32.mrf.mxu0
    %208 = vdwg.mxu0
    %v210 = vrot.slane %v42, 2
    %v212 = vadd.f32 %v210, %v206
    %v213 = vxor.u32 %v126, 2147483648
    %v214 = vmul.f32 %v213, 1.442695
    %v215 = vpow.pop %v214
    %v216 = vadd.f32 %v215, 1.0
    %v217 = vrcp.pop %v216
    %v218 = vmul.f32 1.0, %v217
    %v219 = vtanh.pop %v126
    %v220 = vmul.f32 %v218, %v31
    %222 = vrot.lane.b32.xlu0 %v219, 32
    %v223 = vpop.permute.xlu0 %222
    %v225 = vmul.f32 %v218, %v223
    %227 = vrot.lane.b32.xlu0 %v225, 32
    %v228 = vpop.permute.xlu0 %227
    %v230 = vadd.f32 %v220, %v228
    %v231 = vtanh.pop %v230
    %233 = vrot.lane.b32.xlu0 %v231, 32
    %v234 = vpop.permute.xlu0 %233
    %v236 = vmul.f32 %v218, %v234
    %v237 = vxor.u32 %v212, 2147483648
    %v238 = vmul.f32 %v237, 1.442695
    %v239 = vpow.pop %v238
    %v240 = vadd.f32 %v239, 1.0
    %v241 = vrcp.pop %v240
    %v242 = vmul.f32 1.0, %v241
    %v243 = vtanh.pop %v212
    %v244 = vmul.f32 %v242, %v33
    %246 = vrot.lane.b32.xlu0 %v243, 32
    %v247 = vpop.permute.xlu0 %246
    %v249 = vmul.f32 %v242, %v247
    %251 = vrot.lane.b32.xlu0 %v249, 32
    %v252 = vpop.permute.xlu0 %251
    %v254 = vadd.f32 %v244, %v252
    %v255 = vtanh.pop %v254
    %257 = vrot.lane.b32.xlu0 %v255, 32
    %v258 = vpop.permute.xlu0 %257
    %v260 = vmul.f32 %v242, %v258
    %v263 = vunpack.c.l.s4 1983009808
    %v264 = vunpack.c.0.s8 %v263
    %v265 = vlaneseq
    %v266 = vshrl.u32 %v265, 7
    %v267 = vsub.s32 %v264, %v266
    %v268 = vrot.slane %v236, %v267
    %269 = vrot.lane.b32.xlu0 %v268, 64
    %v270 = vpop.permute.xlu0 %269
    %s272 = scalar_lea.vmem %s3, %s35
    %vm273 = vcmask 254976
    %274 = vst.msk [vmem:[%s272] sm:$0x3] %vm273, %v270
    %v277 = vunpack.c.l.s4 1983009808
    %v278 = vunpack.c.0.s8 %v277
    %v279 = vlaneseq
    %v280 = vshrl.u32 %v279, 7
    %v281 = vsub.s32 %v278, %v280
    %v282 = vrot.slane %v260, %v281
    %283 = vrot.lane.b32.xlu0 %v282, 64
    %v284 = vpop.permute.xlu0 %283
    %s286 = scalar_lea.vmem %s4, %s39
    %287 = vst.msk [vmem:[%s286] sm:$0x3] %vm273, %v284
  $region18: #{cnn_rnn_forward.7} parent=0 // loop_footer
    %s29 = sadd.s32 1, %s25
  $region19: #{cnn_rnn_forward.7} parent=0 // loop_footer_branch
    %24 = sbr.rel target = $region15
  $region20: #{cnn_rnn_forward.7} parent=0 // loop_exit
    _
  // Predicated region
  $region21: #{cnn_rnn_forward.7} parent=0 // pred_check
    _
  $region22: #{cnn_rnn_forward.7} parent=0 // pred_check_branch
    %289 = sbr.rel (0) target = $region24
  $region23: #{cnn_rnn_forward.7} parent=0 // pred_region
    _
  $region24: #{cnn_rnn_forward.7} parent=0 // pred_fallthru
    _
  // Predicated region
  $region25: #{cnn_rnn_forward.7} parent=0 // pred_check
    _
  $region26: #{cnn_rnn_forward.7} parent=0 // pred_check_branch
    %291 = sbr.rel (0) target = $region28
  $region27: #{cnn_rnn_forward.7} parent=0 // pred_region
    _
  $region28: #{cnn_rnn_forward.7} parent=0 // pred_fallthru
    _
  // Predicated region
  $region29: #{cnn_rnn_forward.7} parent=0 // pred_check
    _
  $region30: #{cnn_rnn_forward.7} parent=0 // pred_check_branch
    %293 = sbr.rel (0) target = $region32
  $region31: #{cnn_rnn_forward.7} parent=0 // pred_region
    _
  $region32: #{cnn_rnn_forward.7} parent=0 // pred_fallthru
    _
  // Predicated region
  $region33: #{cnn_rnn_forward.7} parent=0 // pred_check
    _
  $region34: #{cnn_rnn_forward.7} parent=0 // pred_check_branch
    %295 = sbr.rel (0) target = $region36
  $region35: #{cnn_rnn_forward.7} parent=0 // pred_region
    _
  $region36: #{cnn_rnn_forward.7} parent=0 // pred_fallthru
    _

</llo_original>
